<compile_context>
chip_gen: v7x
topology: tpu7x:2x2x1
jax: 0.10.0
libtpu: 0.0.40
codegen_flags: <defaults>
</compile_context>

<pallas_src>
import functools

import jax
import jax.numpy as jnp
from jax import lax
from jax.experimental import pallas as pl
from jax.experimental.pallas import tpu as pltpu


_SQRT_2_OVER_PI = 0.7978845608028654
_MIB = 1024 * 1024
_SUB = 256  # inner intermediate sub-chunk; matches the 256-wide v6e/v7x MXU


def _gelu_tanh_f32(x):
    # PyTorch gelu(approximate='tanh'), evaluated in f32.
    return 0.5 * x * (1.0 + jnp.tanh(_SQRT_2_OVER_PI * (x + 0.044715 * (x * x * x))))


def _round_up(x, m):
    return ((x + m - 1) // m) * m


def _cdiv(a, b):
    return (a + b - 1) // b


def _vmem_capacity_bytes():
    try:
        cap = int(getattr(pltpu.get_tpu_info(), "vmem_capacity_bytes", 0))
        if cap > 0:
            return cap
    except Exception:
        pass
    return 64 * _MIB  # conservative (v7x-sized) fallback


def _weight_spec(block_shape, index_map, n_buf):
    # Triple-buffer weight chunks when requested (hides weight-chunk DMA on
    # v5e); fall back silently if this JAX build lacks pipeline_mode/Buffered.
    if n_buf > 2 and hasattr(pl, "Buffered"):
        try:
            return pl.BlockSpec(block_shape, index_map,
                                pipeline_mode=pl.Buffered(n_buf))
        except Exception:
            pass
    return pl.BlockSpec(block_shape, index_map)


def _siglip_mlp_kernel(x_ref, w1_ref, b1_ref, w2_ref, b2_ref, o_ref, acc_ref, *, sub):
    """Grid = (token tiles [parallel], intermediate chunks [arbitrary reduction]).

    Per step (i, k), for each `sub`-wide slice s of the current w1/w2 chunk:
        h_s    = gelu_tanh(x_i @ w1[:, s] + b1[s])   # bf16 MXU inputs, f32 epilogue
        acc_i += h_s @ w2[s, :]                      # f32 VMEM accumulator
    acc is seeded with b2 at k == 0 and written to o_ref at the last chunk.
    """
    k = pl.program_id(1)
    ti = w1_ref.shape[1]
    n_sub = ti // sub

    @pl.when(k == 0)
    def _init():
        # b2 added exactly once, into the f32 accumulator.
        acc_ref[...] = jnp.broadcast_to(
            b2_ref[...].astype(jnp.float32), acc_ref.shape)

    x = x_ref[...]  # hoisted: one VMEM load, reused by every sub-chunk

    def _sub_step(s, carry):
        off = pl.multiple_of(s * sub, sub)
        # fc1 sub-chunk: native-dtype MXU inputs, f32 accumulation.
        h = jnp.dot(x, w1_ref[:, pl.ds(off, sub)],
                    preferred_element_type=jnp.float32)
        # Bias + tanh-GELU epilogue in f32.
        h = _gelu_tanh_f32(h + b1_ref[:, pl.ds(off, sub)].astype(jnp.float32))
        # fc2 partial product: downcast h once, accumulator stays f32.
        acc_ref[...] += jnp.dot(h.astype(w2_ref.dtype), w2_ref[pl.ds(off, sub), :],
                                preferred_element_type=jnp.float32)
        return carry

    lax.fori_loop(0, n_sub, _sub_step, 0, unroll=(n_sub <= 8))

    @pl.when(k == pl.num_programs(1) - 1)
    def _finalize():
        o_ref[...] = acc_ref[...].astype(o_ref.dtype)


@functools.partial(jax.jit, static_argnames=("tm", "ti", "weights_resident"))
def siglip_mlp(x, w1, b1, w2, b2, *, tm=None, ti=None, weights_resident=None):
    """Fused SigLIP MLP: gelu_tanh(x @ w1 + b1) @ w2 + b2.

    x: [B, S, H]; w1: [H, I]; b1: [I]; w2: [I, H]; b2: [H].
    """
    B, S, H = x.shape
    I = w1.shape[1]
    M = B * S

    bpe_act = x.dtype.itemsize
    bpe_w = w1.dtype.itemsize

    # ---- generation-aware VMEM budget -------------------------------------
    cap = _vmem_capacity_bytes()
    vmem_limit = min(cap, max(cap - 12 * _MIB, 32 * _MIB))
    budget = vmem_limit - 8 * _MIB       # headroom for compiler internal scratch

    # ---- pad I so weight chunks stay 256-lane aligned (so400m: 4304 -> 4352)
    I_pad = _round_up(I, _SUB)
    sub = _SUB

    # ---- token tile --------------------------------------------------------
    # v6e needs ~650+ rows to be compute-bound at 1.4 TB/s HBM; v7x only ~320
    # but has 64 MiB VMEM, so default 512 there.  Round to 16 (bf16 packing).
    tm_req = tm if tm is not None else (1024 if cap >= 100 * _MIB else 512)
    tm_eff = min(_round_up(max(tm_req, 16), 16), _round_up(M, 16))
    # v7x megacore: give the 'parallel' token axis at least 2 tiles.
    if cap < 100 * _MIB and M > 512 and _cdiv(M, tm_eff) < 2:
        tm_eff = max(256, _round_up(_cdiv(M, 2), 16))

    def _vmem_need(tm_, ti_, n_buf_w):
        return (2 * 2 * tm_ * H * bpe_act          # x + out tiles, double-buffered
                + tm_ * H * 4                      # f32 accumulator scratch
                + 2 * tm_ * sub * 4                # f32 h sub-chunk temporary (slack)
                + n_buf_w * 2 * H * ti_ * bpe_w    # w1 + w2 chunks
                + 2 * 2 * (ti_ + H) * bpe_w)       # b1 + b2 (tiny)

    # Shrink tm if even the smallest weight chunk would not fit.
    while tm_eff > 256 and _vmem_need(tm_eff, sub, 2) > budget:
        tm_eff = max(256, _round_up(tm_eff // 2, 16))

    # ---- weight residency vs. chunked reduction ----------------------------
    if weights_resident is None:
        weights_resident = _vmem_need(tm_eff, I_pad, 2) <= budget
    if weights_resident:
        # Constant weight index_maps -> Pallas fetches w1/w2 from HBM once.
        ti_eff = I_pad
        n_buf_w = 2
    else:
        ti_req = _round_up(max(ti if ti is not None else 1024, sub), sub)
        q = I_pad // sub
        ti_eff = sub
        for d in range(1, q + 1):
            cand = sub * d
            if q % d == 0 and cand <= ti_req and _vmem_need(tm_eff, cand, 2) <= budget:
                ti_eff = cand
        grid_k = I_pad // ti_eff
        n_buf_w = 3 if (grid_k >= 3 and _vmem_need(tm_eff, ti_eff, 3) <= budget) else 2

    M_pad = _round_up(M, tm_eff)
    grid = (M_pad // tm_eff, I_pad // ti_eff)

    # ---- pad operands (zero pads keep the result exact: w2 pad rows are 0) --
    x2d = x.reshape(M, H)
    if M_pad != M:
        x2d = jnp.pad(x2d, ((0, M_pad - M), (0, 0)))
    if I_pad != I:
        w1 = jnp.pad(w1, ((0, 0), (0, I_pad - I)))
        b1 = jnp.pad(b1, ((0, I_pad - I),))
        w2 = jnp.pad(w2, ((0, I_pad - I), (0, 0)))
    b1_2d = b1.reshape(1, I_pad)
    b2_2d = b2.reshape(1, H)

    # ---- cost hint: weights stream once (resident) or once per token tile ---
    w_reads = 1 if grid[1] == 1 else grid[0]
    cost = pl.CostEstimate(
        flops=4 * M_pad * H * I_pad,          # two matmuls, 2*M*H*I flops each
        transcendentals=M_pad * I_pad,        # one tanh per hidden element
        bytes_accessed=(2 * M_pad * H * bpe_act
                        + w_reads * (2 * H * I_pad + I_pad) * bpe_w
                        + H * bpe_w),
    )

    out2d = pl.pallas_call(
        functools.partial(_siglip_mlp_kernel, sub=sub),
        out_shape=jax.ShapeDtypeStruct((M_pad, H), x.dtype),
        grid_spec=pltpu.PrefetchScalarGridSpec(
            num_scalar_prefetch=0,
            grid=grid,
            in_specs=[
                pl.BlockSpec((tm_eff, H), lambda i, k: (i, 0)),            # x row tile
                _weight_spec((H, ti_eff), lambda i, k: (0, k), n_buf_w),   # w1 chunk
                pl.BlockSpec((1, ti_eff), lambda i, k: (0, k)),            # b1 chunk
                _weight_spec((ti_eff, H), lambda i, k: (k, 0), n_buf_w),   # w2 chunk
                pl.BlockSpec((1, H), lambda i, k: (0, 0)),                 # b2
            ],
            out_specs=pl.BlockSpec((tm_eff, H), lambda i, k: (i, 0)),
            scratch_shapes=[pltpu.VMEM((tm_eff, H), jnp.float32)],
        ),
        compiler_params=pltpu.CompilerParams(
            dimension_semantics=("parallel", "arbitrary"),
            vmem_limit_bytes=int(vmem_limit),
        ),
        cost_estimate=cost,
    )(x2d, w1, b1_2d, w2, b2_2d)

    if M_pad != M:
        out2d = out2d[:M]
    return out2d.reshape(B, S, H)


def _reference_mlp(x, w1, b1, w2, b2):
    xf = x.astype(jnp.float32)
    h = jnp.einsum("bsh,hi->bsi", xf, w1.astype(jnp.float32)) + b1.astype(jnp.float32)
    h = _gelu_tanh_f32(h)
    return jnp.einsum("bsi,ih->bsh", h, w2.astype(jnp.float32)) + b2.astype(jnp.float32)


if __name__ == "__main__":
    # Small config consistent with SiglipVisionConfig semantics (tokens = patches).
    batch, seq = 2, 16
    hidden_size = 32
    intermediate_size = 896   # not a multiple of 256 -> exercises the I padding path

    key = jax.random.PRNGKey(0)
    kx, kw1, kb1, kw2, kb2 = jax.random.split(key, 5)

    dtype = jnp.bfloat16  # native MXU input dtype; accumulation stays in f32
    x = jax.random.normal(kx, (batch, seq, hidden_size), jnp.float32).astype(dtype)
    w1 = (jax.random.normal(kw1, (hidden_size, intermediate_size), jnp.float32) * 0.05).astype(dtype)
    b1 = (jax.random.normal(kb1, (intermediate_size,), jnp.float32) * 0.05).astype(dtype)
    w2 = (jax.random.normal(kw2, (intermediate_size, hidden_size), jnp.float32) * 0.05).astype(dtype)
    b2 = (jax.random.normal(kb2, (hidden_size,), jnp.float32) * 0.05).astype(dtype)

    ref = _reference_mlp(x, w1, b1, w2, b2)

    # 1) Auto config: weights become VMEM-resident (single HBM fetch); the
    #    kernel loops internally over 256-wide intermediate sub-chunks.
    out = jax.block_until_ready(siglip_mlp(x, w1, b1, w2, b2))
    assert out.shape == (batch, seq, hidden_size)
    assert jnp.allclose(out.astype(jnp.float32), ref, atol=2e-2, rtol=2e-2), \
        "mismatch vs reference (resident weights)"

    # 2) Forced chunked reduction: multi-step k grid exercising the f32
    #    accumulator init/finalize, several token tiles, and (when supported)
    #    triple-buffered weight chunks.
    out2 = jax.block_until_ready(
        siglip_mlp(x, w1, b1, w2, b2, tm=16, ti=256, weights_resident=False))
    assert jnp.allclose(out2.astype(jnp.float32), ref, atol=2e-2, rtol=2e-2), \
        "mismatch vs reference (chunked reduction)"

    print("KERNEL_OK")
</pallas_src>

<mosaic_0001>
module attributes {stable_mosaic.version = 11 : i64} {
  func.func @_siglip_mlp_kernel(%arg0: i32, %arg1: i32, %arg2: memref<32x32xbf16, #tpu.memory_space<vmem>>, %arg3: memref<32x1024xbf16, #tpu.memory_space<vmem>>, %arg4: memref<1x1024xbf16, #tpu.memory_space<vmem>>, %arg5: memref<1024x32xbf16, #tpu.memory_space<vmem>>, %arg6: memref<1x32xbf16, #tpu.memory_space<vmem>>, %arg7: memref<32x32xbf16, #tpu.memory_space<vmem>>, %arg8: memref<32x32xf32, #tpu.memory_space<vmem>>) attributes {dimension_semantics = [#tpu.dimension_semantics<parallel>, #tpu.dimension_semantics<arbitrary>], iteration_bounds = array<i64: 1, 1>, scalar_prefetch = 0 : i64, scratch_operands = 1 : i64, tpu.core_type = #tpu.core_type<tc>, window_params = [{transform_indices = @transform_0, window_bounds = array<i64: 32, 32>}, {transform_indices = @transform_1, window_bounds = array<i64: 32, 1024>}, {transform_indices = @transform_2, window_bounds = array<i64: 1, 1024>}, {transform_indices = @transform_3, window_bounds = array<i64: 1024, 32>}, {pipeline_mode = #tpu.pipeline_mode<synchronous>, transform_indices = @transform_4, window_bounds = array<i64: 1, 32>}, {transform_indices = @transform_5, window_bounds = array<i64: 32, 32>}]} {
    %c0_i32 = arith.constant 0 : i32
    %0 = arith.cmpi eq, %arg1, %c0_i32 : i32
    %1 = arith.extui %0 : i1 to i32
    %c0_i32_0 = arith.constant 0 : i32
    %2 = arith.cmpi ne, %1, %c0_i32_0 : i32
    scf.if %2 {
      %c0_59 = arith.constant 0 : index
      %c0_60 = arith.constant 0 : index
      %127 = vector.load %arg6[%c0_59, %c0_60] : memref<1x32xbf16, #tpu.memory_space<vmem>>, vector<1x32xbf16>
      %128 = arith.extf %127 : vector<1x32xbf16> to vector<1x32xf32>
      %129 = vector.shape_cast %128 : vector<1x32xf32> to vector<1x32xf32>
      %130 = vector.broadcast %129 : vector<1x32xf32> to vector<32x32xf32>
      %c0_61 = arith.constant 0 : index
      %c0_62 = arith.constant 0 : index
      %131 = vector.load %arg8[%c0_61, %c0_62] : memref<32x32xf32, #tpu.memory_space<vmem>>, vector<32x32xf32>
      tpu.vector_store %arg8[%c0_61, %c0_62], %130 {strides = array<i32>} : memref<32x32xf32, #tpu.memory_space<vmem>>, vector<32x32xf32>,
    } else {
    }
    %c0 = arith.constant 0 : index
    %c0_1 = arith.constant 0 : index
    %3 = vector.load %arg2[%c0, %c0_1] : memref<32x32xbf16, #tpu.memory_space<vmem>>, vector<32x32xbf16>
    %c0_i32_2 = arith.constant 0 : i32
    %c256_i32 = arith.constant 256 : i32
    %4 = arith.muli %c0_i32_2, %c256_i32 : i32
    %5 = tpu.assume_multiple %4, 256 : i32
    %c0_3 = arith.constant 0 : index
    %6 = arith.index_cast %5 : i32 to index
    %7 = vector.load %arg3[%c0_3, %6] : memref<32x1024xbf16, #tpu.memory_space<vmem>>, vector<32x256xbf16>
    %cst = arith.constant dense<0.000000e+00> : vector<32x256xf32>
    %8 = tpu.matmul %3, %7, %cst {dimension_numbers = #tpu.dot_dimension_numbers<[1], [0], [0], [1], [0, 0, 1, 1], [], []>} : vector<32x32xbf16>, vector<32x256xbf16>, vector<32x256xf32> -> vector<32x256xf32>
    %c0_4 = arith.constant 0 : index
    %9 = arith.index_cast %5 : i32 to index
    %10 = vector.load %arg4[%c0_4, %9] : memref<1x1024xbf16, #tpu.memory_space<vmem>>, vector<1x256xbf16>
    %11 = arith.extf %10 : vector<1x256xbf16> to vector<1x256xf32>
    %12 = vector.broadcast %11 : vector<1x256xf32> to vector<32x256xf32>
    %13 = arith.addf %8, %12 : vector<32x256xf32>
    %cst_5 = arith.constant 5.000000e-01 : f32
    %14 = vector.broadcast %cst_5 : f32 to vector<32x256xf32>
    %15 = arith.mulf %14, %13 : vector<32x256xf32>
    %16 = arith.mulf %13, %13 : vector<32x256xf32>
    %17 = arith.mulf %16, %13 : vector<32x256xf32>
    %cst_6 = arith.constant 4.471500e-02 : f32
    %18 = vector.broadcast %cst_6 : f32 to vector<32x256xf32>
    %19 = arith.mulf %18, %17 : vector<32x256xf32>
    %20 = arith.addf %13, %19 : vector<32x256xf32>
    %cst_7 = arith.constant 0.797884583 : f32
    %21 = vector.broadcast %cst_7 : f32 to vector<32x256xf32>
    %22 = arith.mulf %21, %20 : vector<32x256xf32>
    %23 = math.tanh %22 : vector<32x256xf32>
    %cst_8 = arith.constant 1.000000e+00 : f32
    %24 = vector.broadcast %cst_8 : f32 to vector<32x256xf32>
    %25 = arith.addf %24, %23 : vector<32x256xf32>
    %26 = arith.mulf %15, %25 : vector<32x256xf32>
    %c0_9 = arith.constant 0 : index
    %c0_10 = arith.constant 0 : index
    %27 = vector.load %arg8[%c0_9, %c0_10] : memref<32x32xf32, #tpu.memory_space<vmem>>, vector<32x32xf32>
    %28 = arith.truncf %26 : vector<32x256xf32> to vector<32x256xbf16>
    %29 = arith.index_cast %5 : i32 to index
    %c0_11 = arith.constant 0 : index
    %30 = vector.load %arg5[%29, %c0_11] : memref<1024x32xbf16, #tpu.memory_space<vmem>>, vector<256x32xbf16>
    %cst_12 = arith.constant dense<0.000000e+00> : vector<32x32xf32>
    %31 = tpu.matmul %28, %30, %cst_12 {dimension_numbers = #tpu.dot_dimension_numbers<[1], [0], [0], [1], [0, 0, 1, 1], [], []>} : vector<32x256xbf16>, vector<256x32xbf16>, vector<32x32xf32> -> vector<32x32xf32>
    %32 = arith.addf %27, %31 : vector<32x32xf32>
    %c0_13 = arith.constant 0 : index
    %c0_14 = arith.constant 0 : index
    %33 = vector.load %arg8[%c0_13, %c0_14] : memref<32x32xf32, #tpu.memory_space<vmem>>, vector<32x32xf32>
    tpu.vector_store %arg8[%c0_13, %c0_14], %32 {strides = array<i32>} : memref<32x32xf32, #tpu.memory_space<vmem>>, vector<32x32xf32>,
    %c1_i32 = arith.constant 1 : i32
    %c256_i32_15 = arith.constant 256 : i32
    %34 = arith.muli %c1_i32, %c256_i32_15 : i32
    %35 = tpu.assume_multiple %34, 256 : i32
    %c0_16 = arith.constant 0 : index
    %36 = arith.index_cast %35 : i32 to index
    %37 = vector.load %arg3[%c0_16, %36] : memref<32x1024xbf16, #tpu.memory_space<vmem>>, vector<32x256xbf16>
    %cst_17 = arith.constant dense<0.000000e+00> : vector<32x256xf32>
    %38 = tpu.matmul %3, %37, %cst_17 {dimension_numbers = #tpu.dot_dimension_numbers<[1], [0], [0], [1], [0, 0, 1, 1], [], []>} : vector<32x32xbf16>, vector<32x256xbf16>, vector<32x256xf32> -> vector<32x256xf32>
    %c0_18 = arith.constant 0 : index
    %39 = arith.index_cast %35 : i32 to index
    %40 = vector.load %arg4[%c0_18, %39] : memref<1x1024xbf16, #tpu.memory_space<vmem>>, vector<1x256xbf16>
    %41 = arith.extf %40 : vector<1x256xbf16> to vector<1x256xf32>
    %42 = vector.broadcast %41 : vector<1x256xf32> to vector<32x256xf32>
    %43 = arith.addf %38, %42 : vector<32x256xf32>
    %cst_19 = arith.constant 5.000000e-01 : f32
    %44 = vector.broadcast %cst_19 : f32 to vector<32x256xf32>
    %45 = arith.mulf %44, %43 : vector<32x256xf32>
    %46 = arith.mulf %43, %43 : vector<32x256xf32>
    %47 = arith.mulf %46, %43 : vector<32x256xf32>
    %cst_20 = arith.constant 4.471500e-02 : f32
    %48 = vector.broadcast %cst_20 : f32 to vector<32x256xf32>
    %49 = arith.mulf %48, %47 : vector<32x256xf32>
    %50 = arith.addf %43, %49 : vector<32x256xf32>
    %cst_21 = arith.constant 0.797884583 : f32
    %51 = vector.broadcast %cst_21 : f32 to vector<32x256xf32>
    %52 = arith.mulf %51, %50 : vector<32x256xf32>
    %53 = math.tanh %52 : vector<32x256xf32>
    %cst_22 = arith.constant 1.000000e+00 : f32
    %54 = vector.broadcast %cst_22 : f32 to vector<32x256xf32>
    %55 = arith.addf %54, %53 : vector<32x256xf32>
    %56 = arith.mulf %45, %55 : vector<32x256xf32>
    %c0_23 = arith.constant 0 : index
    %c0_24 = arith.constant 0 : index
    %57 = vector.load %arg8[%c0_23, %c0_24] : memref<32x32xf32, #tpu.memory_space<vmem>>, vector<32x32xf32>
    %58 = arith.truncf %56 : vector<32x256xf32> to vector<32x256xbf16>
    %59 = arith.index_cast %35 : i32 to index
    %c0_25 = arith.constant 0 : index
    %60 = vector.load %arg5[%59, %c0_25] : memref<1024x32xbf16, #tpu.memory_space<vmem>>, vector<256x32xbf16>
    %cst_26 = arith.constant dense<0.000000e+00> : vector<32x32xf32>
    %61 = tpu.matmul %58, %60, %cst_26 {dimension_numbers = #tpu.dot_dimension_numbers<[1], [0], [0], [1], [0, 0, 1, 1], [], []>} : vector<32x256xbf16>, vector<256x32xbf16>, vector<32x32xf32> -> vector<32x32xf32>
    %62 = arith.addf %57, %61 : vector<32x32xf32>
    %c0_27 = arith.constant 0 : index
    %c0_28 = arith.constant 0 : index
    %63 = vector.load %arg8[%c0_27, %c0_28] : memref<32x32xf32, #tpu.memory_space<vmem>>, vector<32x32xf32>
    tpu.vector_store %arg8[%c0_27, %c0_28], %62 {strides = array<i32>} : memref<32x32xf32, #tpu.memory_space<vmem>>, vector<32x32xf32>,
    %c2_i32 = arith.constant 2 : i32
    %c256_i32_29 = arith.constant 256 : i32
    %64 = arith.muli %c2_i32, %c256_i32_29 : i32
    %65 = tpu.assume_multiple %64, 256 : i32
    %c0_30 = arith.constant 0 : index
    %66 = arith.index_cast %65 : i32 to index
    %67 = vector.load %arg3[%c0_30, %66] : memref<32x1024xbf16, #tpu.memory_space<vmem>>, vector<32x256xbf16>
    %cst_31 = arith.constant dense<0.000000e+00> : vector<32x256xf32>
    %68 = tpu.matmul %3, %67, %cst_31 {dimension_numbers = #tpu.dot_dimension_numbers<[1], [0], [0], [1], [0, 0, 1, 1], [], []>} : vector<32x32xbf16>, vector<32x256xbf16>, vector<32x256xf32> -> vector<32x256xf32>
    %c0_32 = arith.constant 0 : index
    %69 = arith.index_cast %65 : i32 to index
    %70 = vector.load %arg4[%c0_32, %69] : memref<1x1024xbf16, #tpu.memory_space<vmem>>, vector<1x256xbf16>
    %71 = arith.extf %70 : vector<1x256xbf16> to vector<1x256xf32>
    %72 = vector.broadcast %71 : vector<1x256xf32> to vector<32x256xf32>
    %73 = arith.addf %68, %72 : vector<32x256xf32>
    %cst_33 = arith.constant 5.000000e-01 : f32
    %74 = vector.broadcast %cst_33 : f32 to vector<32x256xf32>
    %75 = arith.mulf %74, %73 : vector<32x256xf32>
    %76 = arith.mulf %73, %73 : vector<32x256xf32>
    %77 = arith.mulf %76, %73 : vector<32x256xf32>
    %cst_34 = arith.constant 4.471500e-02 : f32
    %78 = vector.broadcast %cst_34 : f32 to vector<32x256xf32>
    %79 = arith.mulf %78, %77 : vector<32x256xf32>
    %80 = arith.addf %73, %79 : vector<32x256xf32>
    %cst_35 = arith.constant 0.797884583 : f32
    %81 = vector.broadcast %cst_35 : f32 to vector<32x256xf32>
    %82 = arith.mulf %81, %80 : vector<32x256xf32>
    %83 = math.tanh %82 : vector<32x256xf32>
    %cst_36 = arith.constant 1.000000e+00 : f32
    %84 = vector.broadcast %cst_36 : f32 to vector<32x256xf32>
    %85 = arith.addf %84, %83 : vector<32x256xf32>
    %86 = arith.mulf %75, %85 : vector<32x256xf32>
    %c0_37 = arith.constant 0 : index
    %c0_38 = arith.constant 0 : index
    %87 = vector.load %arg8[%c0_37, %c0_38] : memref<32x32xf32, #tpu.memory_space<vmem>>, vector<32x32xf32>
    %88 = arith.truncf %86 : vector<32x256xf32> to vector<32x256xbf16>
    %89 = arith.index_cast %65 : i32 to index
    %c0_39 = arith.constant 0 : index
    %90 = vector.load %arg5[%89, %c0_39] : memref<1024x32xbf16, #tpu.memory_space<vmem>>, vector<256x32xbf16>
    %cst_40 = arith.constant dense<0.000000e+00> : vector<32x32xf32>
    %91 = tpu.matmul %88, %90, %cst_40 {dimension_numbers = #tpu.dot_dimension_numbers<[1], [0], [0], [1], [0, 0, 1, 1], [], []>} : vector<32x256xbf16>, vector<256x32xbf16>, vector<32x32xf32> -> vector<32x32xf32>
    %92 = arith.addf %87, %91 : vector<32x32xf32>
    %c0_41 = arith.constant 0 : index
    %c0_42 = arith.constant 0 : index
    %93 = vector.load %arg8[%c0_41, %c0_42] : memref<32x32xf32, #tpu.memory_space<vmem>>, vector<32x32xf32>
    tpu.vector_store %arg8[%c0_41, %c0_42], %92 {strides = array<i32>} : memref<32x32xf32, #tpu.memory_space<vmem>>, vector<32x32xf32>,
    %c3_i32 = arith.constant 3 : i32
    %c256_i32_43 = arith.constant 256 : i32
    %94 = arith.muli %c3_i32, %c256_i32_43 : i32
    %95 = tpu.assume_multiple %94, 256 : i32
    %c0_44 = arith.constant 0 : index
    %96 = arith.index_cast %95 : i32 to index
    %97 = vector.load %arg3[%c0_44, %96] : memref<32x1024xbf16, #tpu.memory_space<vmem>>, vector<32x256xbf16>
    %cst_45 = arith.constant dense<0.000000e+00> : vector<32x256xf32>
    %98 = tpu.matmul %3, %97, %cst_45 {dimension_numbers = #tpu.dot_dimension_numbers<[1], [0], [0], [1], [0, 0, 1, 1], [], []>} : vector<32x32xbf16>, vector<32x256xbf16>, vector<32x256xf32> -> vector<32x256xf32>
    %c0_46 = arith.constant 0 : index
    %99 = arith.index_cast %95 : i32 to index
    %100 = vector.load %arg4[%c0_46, %99] : memref<1x1024xbf16, #tpu.memory_space<vmem>>, vector<1x256xbf16>
    %101 = arith.extf %100 : vector<1x256xbf16> to vector<1x256xf32>
    %102 = vector.broadcast %101 : vector<1x256xf32> to vector<32x256xf32>
    %103 = arith.addf %98, %102 : vector<32x256xf32>
    %cst_47 = arith.constant 5.000000e-01 : f32
    %104 = vector.broadcast %cst_47 : f32 to vector<32x256xf32>
    %105 = arith.mulf %104, %103 : vector<32x256xf32>
    %106 = arith.mulf %103, %103 : vector<32x256xf32>
    %107 = arith.mulf %106, %103 : vector<32x256xf32>
    %cst_48 = arith.constant 4.471500e-02 : f32
    %108 = vector.broadcast %cst_48 : f32 to vector<32x256xf32>
    %109 = arith.mulf %108, %107 : vector<32x256xf32>
    %110 = arith.addf %103, %109 : vector<32x256xf32>
    %cst_49 = arith.constant 0.797884583 : f32
    %111 = vector.broadcast %cst_49 : f32 to vector<32x256xf32>
    %112 = arith.mulf %111, %110 : vector<32x256xf32>
    %113 = math.tanh %112 : vector<32x256xf32>
    %cst_50 = arith.constant 1.000000e+00 : f32
    %114 = vector.broadcast %cst_50 : f32 to vector<32x256xf32>
    %115 = arith.addf %114, %113 : vector<32x256xf32>
    %116 = arith.mulf %105, %115 : vector<32x256xf32>
    %c0_51 = arith.constant 0 : index
    %c0_52 = arith.constant 0 : index
    %117 = vector.load %arg8[%c0_51, %c0_52] : memref<32x32xf32, #tpu.memory_space<vmem>>, vector<32x32xf32>
    %118 = arith.truncf %116 : vector<32x256xf32> to vector<32x256xbf16>
    %119 = arith.index_cast %95 : i32 to index
    %c0_53 = arith.constant 0 : index
    %120 = vector.load %arg5[%119, %c0_53] : memref<1024x32xbf16, #tpu.memory_space<vmem>>, vector<256x32xbf16>
    %cst_54 = arith.constant dense<0.000000e+00> : vector<32x32xf32>
    %121 = tpu.matmul %118, %120, %cst_54 {dimension_numbers = #tpu.dot_dimension_numbers<[1], [0], [0], [1], [0, 0, 1, 1], [], []>} : vector<32x256xbf16>, vector<256x32xbf16>, vector<32x32xf32> -> vector<32x32xf32>
    %122 = arith.addf %117, %121 : vector<32x32xf32>
    %c0_55 = arith.constant 0 : index
    %c0_56 = arith.constant 0 : index
    %123 = vector.load %arg8[%c0_55, %c0_56] : memref<32x32xf32, #tpu.memory_space<vmem>>, vector<32x32xf32>
    tpu.vector_store %arg8[%c0_55, %c0_56], %122 {strides = array<i32>} : memref<32x32xf32, #tpu.memory_space<vmem>>, vector<32x32xf32>,
    %c4_i32 = arith.constant 4 : i32
    %c0_i32_57 = arith.constant 0 : i32
    %124 = arith.cmpi eq, %arg1, %c0_i32_57 : i32
    %125 = arith.extui %124 : i1 to i32
    %c0_i32_58 = arith.constant 0 : i32
    %126 = arith.cmpi ne, %125, %c0_i32_58 : i32
    scf.if %126 {
      %c0_59 = arith.constant 0 : index
      %c0_60 = arith.constant 0 : index
      %127 = vector.load %arg8[%c0_59, %c0_60] : memref<32x32xf32, #tpu.memory_space<vmem>>, vector<32x32xf32>
      %128 = arith.truncf %127 : vector<32x32xf32> to vector<32x32xbf16>
      %c0_61 = arith.constant 0 : index
      %c0_62 = arith.constant 0 : index
      %129 = vector.load %arg7[%c0_61, %c0_62] : memref<32x32xbf16, #tpu.memory_space<vmem>>, vector<32x32xbf16>
      tpu.vector_store %arg7[%c0_61, %c0_62], %128 {strides = array<i32>} : memref<32x32xbf16, #tpu.memory_space<vmem>>, vector<32x32xbf16>,
    } else {
    }
    return
  }
  func.func @transform_0(%arg0: i32, %arg1: i32) -> (i32, i32) {
    %c0_i32 = arith.constant 0 : i32
    %c0_i32_0 = arith.constant 0 : i32
    return %arg0, %c0_i32 : i32, i32
  }
  func.func @transform_1(%arg0: i32, %arg1: i32) -> (i32, i32) {
    %c0_i32 = arith.constant 0 : i32
    %c0_i32_0 = arith.constant 0 : i32
    return %c0_i32, %arg1 : i32, i32
  }
  func.func @transform_2(%arg0: i32, %arg1: i32) -> (i32, i32) {
    %c0_i32 = arith.constant 0 : i32
    %c0_i32_0 = arith.constant 0 : i32
    return %c0_i32, %arg1 : i32, i32
  }
  func.func @transform_3(%arg0: i32, %arg1: i32) -> (i32, i32) {
    %c0_i32 = arith.constant 0 : i32
    %c0_i32_0 = arith.constant 0 : i32
    return %arg1, %c0_i32 : i32, i32
  }
  func.func @transform_4(%arg0: i32, %arg1: i32) -> (i32, i32) {
    %c0_i32 = arith.constant 0 : i32
    %c0_i32_0 = arith.constant 0 : i32
    %c0_i32_1 = arith.constant 0 : i32
    return %c0_i32, %c0_i32_0 : i32, i32
  }
  func.func @transform_5(%arg0: i32, %arg1: i32) -> (i32, i32) {
    %c0_i32 = arith.constant 0 : i32
    %c0_i32_0 = arith.constant 0 : i32
    return %arg0, %c0_i32 : i32, i32
  }
}

</mosaic_0001>

<llo_original>
// kernel: siglip_mlp.1
$region0: #{siglip_mlp.1}
  #allocation0 [shape = 'u32[]', space=smem, size = 0x4, offset = 0x4, fixed_abs, tag = 'smem constant byte address 0x4 - core index']
  #allocation1 [shape = 'u32[144,128]{1,0:T(1,128)}', space=vmem, size = 0x12000, scoped, tag = 'internal scratch']
  #allocation2 [shape = 'f32[32,32]{1,0:T(8,128)}', space=vmem, size = 0x4000, scoped, tag = 'scratch operand']
  %s0 = inlined_call_operand.vmem [shape: bf16[32,32], index: 0, kind: input, shape index: {}]
  %s1 = inlined_call_operand.vmem [shape: bf16[32,1024], index: 1, kind: input, shape index: {}]
  %s2 = inlined_call_operand.vmem [shape: bf16[1,1024], index: 2, kind: input, shape index: {}]
  %s3 = inlined_call_operand.vmem [shape: bf16[1024,32], index: 3, kind: input, shape index: {}]
  %s4 = inlined_call_operand.vmem [shape: bf16[1,32], index: 4, kind: input, shape index: {}]
  %s5 = inlined_call_operand.hbm [shape: bf16[32,32], index: 5, kind: output, shape index: {}]
  %s6 = sld [smem:[#allocation0]]
  $region38: #{siglip_mlp.1} parent=0
    _
  %s8 = ssub.s32 1, %s6
  %s9 = scalar_select 0, %s8, %s6
  $region1: #{siglip_mlp.1} parent=0
    #allocation3 [shape = 'u8[8192]{0}', space=vmem, size = 0x2000, scoped, tag = 'output window, operand 0, single buffered']
    #allocation4 [shape = 's32[1]{0}', space=sflag, size = 0x4, scoped, tag = 'scoped memory for siglip_mlp.1']
    %10 = vsyncpa [#allocation4], 0
    // Predicated region
    $region2: #{siglip_mlp.1} parent=1 // pred_check
      _
    $region3: #{siglip_mlp.1} parent=1 // pred_check_branch
      %12 = sbr.rel (0) target = $region5
    $region4: #{siglip_mlp.1} parent=1 // pred_region
      _
    $region5: #{siglip_mlp.1} parent=1 // pred_fallthru
      _
    // Predicated region
    $region6: #{siglip_mlp.1} parent=1 // pred_check
      _
    $region7: #{siglip_mlp.1} parent=1 // pred_check_branch
      %14 = sbr.rel (0) target = $region9
    $region8: #{siglip_mlp.1} parent=1 // pred_region
      _
    $region9: #{siglip_mlp.1} parent=1 // pred_fallthru
      _
    // Predicated region
    $region10: #{siglip_mlp.1} parent=1 // pred_check
      _
    $region11: #{siglip_mlp.1} parent=1 // pred_check_branch
      %16 = sbr.rel (0) target = $region13
    $region12: #{siglip_mlp.1} parent=1 // pred_region
      _
    $region13: #{siglip_mlp.1} parent=1 // pred_fallthru
      _
    // Predicated region
    $region14: #{siglip_mlp.1} parent=1 // pred_check
      _
    $region15: #{siglip_mlp.1} parent=1 // pred_check_branch
      %18 = sbr.rel (0) target = $region17
    $region16: #{siglip_mlp.1} parent=1 // pred_region
      _
    $region17: #{siglip_mlp.1} parent=1 // pred_fallthru
      _
    // Predicated region
    $region18: #{siglip_mlp.1} parent=1 // pred_check
      _
    $region19: #{siglip_mlp.1} parent=1 // pred_check_branch
      %20 = sbr.rel (0) target = $region21
    $region20: #{siglip_mlp.1} parent=1 // pred_region
      _
    $region21: #{siglip_mlp.1} parent=1 // pred_fallthru
      _
    %p22 = scmp.eq.s32.totalorder 0, 0
    // Predicated region
    $region22: #{siglip_mlp.1} parent=1 // pred_check
      %p23 = pneg %p22
    $region23: #{siglip_mlp.1} parent=1 // pred_check_branch
      %25 = sbr.rel (%p23) target = $region25
    $region24: #{siglip_mlp.1} parent=1 // pred_region
      %v26 = vld [vmem:[%s4] sm:$0x1]
      %v27 = vunpack.c.l.bf16 %v26
      %v28 = vlaneseq
      %v29 = vshrl.u32 %v28, 7
      %v30 = vsub.s32 0, %v29
      %v31 = vrot.slane %v27, %v30
      %vm32 = vcmask 261120
      %33 = vst.msk [vmem:[#allocation2] sm:$0xff] %vm32, %v31
      %34 = vst.msk [vmem:[#allocation2 + $0x8] sm:$0xff] %vm32, %v31
      %35 = vst.msk [vmem:[#allocation2 + $0x10] sm:$0xff] %vm32, %v31
      %36 = vst.msk [vmem:[#allocation2 + $0x18] sm:$0xff] %vm32, %v31
    $region25: #{siglip_mlp.1} parent=1 // pred_fallthru
      _
    %v37 = vld [vmem:[%s0] sm:$0xf]
    %v38 = vld [vmem:[%s0 + $0x4] sm:$0xf]
    %v39 = vld [vmem:[%s0 + $0x8] sm:$0xf]
    %v40 = vld [vmem:[%s0 + $0xc] sm:$0xf]
    %v41 = vld [vmem:[%s1] sm:$0xff]
    %v42 = vld [vmem:[%s1 + $0x20] sm:$0xff]
    %v43 = vld [vmem:[%s1 + $0x40] sm:$0xff]
    %v44 = vld [vmem:[%s1 + $0x60] sm:$0xff]
    %v45 = vld [vmem:[%s2] sm:$0x3]
    %v46 = vunpack.c.l.bf16 %v45
    %v48 = vlaneseq
    %v49 = vshrl.u32 %v48, 7
    %v50 = vsub.s32 0, %v49
    %v51 = vrot.slane %v46, %v50
    %v52 = vlaneseq
    %v53 = vshrl.u32 %v52, 7
    %v54 = vsub.s32 2, %v53
    %v55 = vrot.slane %v46, %v54
    %v58 = vlaneseq
    %v59 = vshrl.u32 %v58, 7
    %v60 = vsub.s32 0, %v59
    %v61 = vrot.slane %v51, %v60
    %v62 = vlaneseq
    %v63 = vshrl.u32 %v62, 7
    %v64 = vsub.s32 0, %v63
    %v65 = vrot.slane %v55, %v64
    %v70 = vunpack.c.l.b16 %v37
    %v71 = vunpack.c.l.b16 %v38
    %v72 = vunpack.c.l.b16 %v39
    %v73 = vunpack.c.l.b16 %v40
    %v74 = vpack.c.b16 %v71, %v70
    %v75 = vpack.c.b16 %v73, %v72
    %v80 = vunpack.c.l.b16 %v41
    %v81 = vunpack.c.h.b16 %v41
    %v82 = vunpack.c.l.b16 %v42
    %v83 = vunpack.c.h.b16 %v42
    %v84 = vunpack.c.l.b16 %v43
    %v85 = vunpack.c.h.b16 %v43
    %v86 = vunpack.c.l.b16 %v44
    %v87 = vunpack.c.h.b16 %v44
    %v88 = vpack.c.b16 %v82, %v80
    %v89 = vpack.c.b16 %v83, %v81
    %v90 = vpack.c.b16 %v86, %v84
    %v91 = vpack.c.b16 %v87, %v85
    %vm96 = vcmask 261120
    %v98 = vsel %vm96, %v74, 0
    %v101 = vsel %vm96, %v75, 0
    %103 = vmatprep.subr.bf16.mxu0 %v89
    %104 = vmatpush1.bf16.msra.mxu0 %v88
    %105 = vmatprep.subr.bf16.mxu0 %v91
    %106 = vmatpush1.bf16.msra.mxu0 %v90
    %107 = vmatprep.subr.bf16.mxu0 0
    %108 = vmatpush1.bf16.msra.mxu0 0
    %109 = vmatprep.subr.bf16.mxu0 0
    %110 = vmatpush1.bf16.msra.mxu0 0
    %111 = vmatprep.subr.bf16.mxu0 0
    %112 = vmatpush1.bf16.msra.mxu0 0
    %113 = vmatprep.subr.bf16.mxu0 0
    %114 = vmatpush1.bf16.msra.mxu0 0
    %115 = vmatprep.subr.bf16.mxu0 0
    %116 = vmatpush1.bf16.msra.mxu0 0
    %117 = vmatprep.subr.bf16.mxu0 0
    %118 = vmatpush1.bf16.msra.mxu0 0
    %119 = vmatprep.subr.bf16.mxu0 0
    %120 = vmatpush1.bf16.msra.mxu0 0
    %121 = vmatprep.subr.bf16.mxu0 0
    %122 = vmatpush1.bf16.msra.mxu0 0
    %123 = vmatprep.subr.bf16.mxu0 0
    %124 = vmatpush1.bf16.msra.mxu0 0
    %125 = vmatprep.subr.bf16.mxu0 0
    %126 = vmatpush1.bf16.msra.mxu0 0
    %127 = vmatprep.subr.bf16.mxu0 0
    %128 = vmatpush1.bf16.msra.mxu0 0
    %129 = vmatprep.subr.bf16.mxu0 0
    %130 = vmatpush1.bf16.msra.mxu0 0
    %131 = vmatprep.subr.bf16.mxu0 0
    %132 = vmatpush1.bf16.msra.mxu0 0
    %133 = vmatprep.subr.bf16.mxu0 0
    %134 = vmatpush1.bf16.msra.mxu0 0
    %135 = vmatprep.mubr.bf16.mxu0 0
    %136 = vmatmul.mubr.bf16.gmra.mrb[0].mxu0 %v98
    %v137 = vpop.f32.mrb[0].mxu0
    %v138 = vadd.f32 %v61, %v137
    %v139 = vpop.f32.mrb[0].mxu0
    %v140 = vadd.f32 %v65, %v139
    %v141 = vpop.f32.mrb[0].mxu0
    %v142 = vadd.f32 %v61, %v141
    %v143 = vpop.f32.mrb[0].mxu0
    %v144 = vadd.f32 %v65, %v143
    %145 = vmatprep.mubr.bf16.mxu0 0
    %146 = vmatmul.mubr.bf16.gmra.mrb[0].mxu0 %v101
    %v147 = vpop.f32.mrb[0].mxu0
    %v148 = vadd.f32 %v61, %v147
    %v149 = vpop.f32.mrb[0].mxu0
    %v150 = vadd.f32 %v65, %v149
    %v151 = vpop.f32.mrb[0].mxu0
    %v152 = vadd.f32 %v61, %v151
    %v153 = vpop.f32.mrb[0].mxu0
    %v154 = vadd.f32 %v65, %v153
    %155 = vdwg.mxu0
    %v156 = vmul.f32 %v138, 0.5
    %v157 = vmul.f32 %v140, 0.5
    %v158 = vmul.f32 %v142, 0.5
    %v159 = vmul.f32 %v144, 0.5
    %v160 = vmul.f32 %v148, 0.5
    %v161 = vmul.f32 %v150, 0.5
    %v162 = vmul.f32 %v152, 0.5
    %v163 = vmul.f32 %v154, 0.5
    %v164 = vmul.f32 %v138, %v138
    %v165 = vmul.f32 %v140, %v140
    %v166 = vmul.f32 %v142, %v142
    %v167 = vmul.f32 %v144, %v144
    %v168 = vmul.f32 %v148, %v148
    %v169 = vmul.f32 %v150, %v150
    %v170 = vmul.f32 %v152, %v152
    %v171 = vmul.f32 %v154, %v154
    %v172 = vmul.f32 %v164, %v138
    %v173 = vmul.f32 %v165, %v140
    %v174 = vmul.f32 %v166, %v142
    %v175 = vmul.f32 %v167, %v144
    %v176 = vmul.f32 %v168, %v148
    %v177 = vmul.f32 %v169, %v150
    %v178 = vmul.f32 %v170, %v152
    %v179 = vmul.f32 %v171, %v154
    %v180 = vmul.f32 %v172, 0.044715
    %v181 = vmul.f32 %v173, 0.044715
    %v182 = vmul.f32 %v174, 0.044715
    %v183 = vmul.f32 %v175, 0.044715
    %v184 = vmul.f32 %v176, 0.044715
    %v185 = vmul.f32 %v177, 0.044715
    %v186 = vmul.f32 %v178, 0.044715
    %v187 = vmul.f32 %v179, 0.044715
    %v188 = vadd.f32 %v138, %v180
    %v189 = vadd.f32 %v140, %v181
    %v190 = vadd.f32 %v142, %v182
    %v191 = vadd.f32 %v144, %v183
    %v192 = vadd.f32 %v148, %v184
    %v193 = vadd.f32 %v150, %v185
    %v194 = vadd.f32 %v152, %v186
    %v195 = vadd.f32 %v154, %v187
    %v196 = vmul.f32 %v188, 0.7978846
    %v197 = vmul.f32 %v189, 0.7978846
    %v198 = vmul.f32 %v190, 0.7978846
    %v199 = vmul.f32 %v191, 0.7978846
    %v200 = vmul.f32 %v192, 0.7978846
    %v201 = vmul.f32 %v193, 0.7978846
    %v202 = vmul.f32 %v194, 0.7978846
    %v203 = vmul.f32 %v195, 0.7978846
    %v204 = vtanh.pop %v196
    %v205 = vtanh.pop %v197
    %v206 = vtanh.pop %v198
    %v207 = vtanh.pop %v199
    %v208 = vtanh.pop %v200
    %v209 = vtanh.pop %v201
    %v210 = vtanh.pop %v202
    %v211 = vtanh.pop %v203
    %v212 = vadd.f32 %v204, 1.0
    %v213 = vadd.f32 %v205, 1.0
    %v214 = vadd.f32 %v206, 1.0
    %v215 = vadd.f32 %v207, 1.0
    %v216 = vadd.f32 %v208, 1.0
    %v217 = vadd.f32 %v209, 1.0
    %v218 = vadd.f32 %v210, 1.0
    %v219 = vadd.f32 %v211, 1.0
    %v220 = vmul.f32 %v156, %v212
    %v221 = vmul.f32 %v157, %v213
    %v222 = vmul.f32 %v158, %v214
    %v223 = vmul.f32 %v159, %v215
    %v224 = vmul.f32 %v160, %v216
    %v225 = vmul.f32 %v161, %v217
    %v226 = vmul.f32 %v162, %v218
    %v227 = vmul.f32 %v163, %v219
    %v228 = vld [vmem:[#allocation2] sm:$0xff]
    %v229 = vld [vmem:[#allocation2 + $0x8] sm:$0xff]
    %v230 = vld [vmem:[#allocation2 + $0x10] sm:$0xff]
    %v231 = vld [vmem:[#allocation2 + $0x18] sm:$0xff]
    %v232 = vpack.c.bf16 %v222, %v220
    %v233 = vpack.c.bf16 %v223, %v221
    %v234 = vpack.c.bf16 %v226, %v224
    %v235 = vpack.c.bf16 %v227, %v225
    %v236 = vld [vmem:[%s3] sm:$0xf]
    %v237 = vld [vmem:[%s3 + $0x4] sm:$0xf]
    %v238 = vld [vmem:[%s3 + $0x8] sm:$0xf]
    %v239 = vld [vmem:[%s3 + $0xc] sm:$0xf]
    %v240 = vld [vmem:[%s3 + $0x10] sm:$0xf]
    %v241 = vld [vmem:[%s3 + $0x14] sm:$0xf]
    %v242 = vld [vmem:[%s3 + $0x18] sm:$0xf]
    %v243 = vld [vmem:[%s3 + $0x1c] sm:$0xf]
    %v244 = vld [vmem:[%s3 + $0x20] sm:$0xf]
    %v245 = vld [vmem:[%s3 + $0x24] sm:$0xf]
    %v246 = vld [vmem:[%s3 + $0x28] sm:$0xf]
    %v247 = vld [vmem:[%s3 + $0x2c] sm:$0xf]
    %v248 = vld [vmem:[%s3 + $0x30] sm:$0xf]
    %v249 = vld [vmem:[%s3 + $0x34] sm:$0xf]
    %v250 = vld [vmem:[%s3 + $0x38] sm:$0xf]
    %v251 = vld [vmem:[%s3 + $0x3c] sm:$0xf]
    %v252 = vld [vmem:[%s3 + $0x40] sm:$0xf]
    %v253 = vld [vmem:[%s3 + $0x44] sm:$0xf]
    %v254 = vld [vmem:[%s3 + $0x48] sm:$0xf]
    %v255 = vld [vmem:[%s3 + $0x4c] sm:$0xf]
    %v256 = vld [vmem:[%s3 + $0x50] sm:$0xf]
    %v257 = vld [vmem:[%s3 + $0x54] sm:$0xf]
    %v258 = vld [vmem:[%s3 + $0x58] sm:$0xf]
    %v259 = vld [vmem:[%s3 + $0x5c] sm:$0xf]
    %v260 = vld [vmem:[%s3 + $0x60] sm:$0xf]
    %v261 = vld [vmem:[%s3 + $0x64] sm:$0xf]
    %v262 = vld [vmem:[%s3 + $0x68] sm:$0xf]
    %v263 = vld [vmem:[%s3 + $0x6c] sm:$0xf]
    %v264 = vld [vmem:[%s3 + $0x70] sm:$0xf]
    %v265 = vld [vmem:[%s3 + $0x74] sm:$0xf]
    %v266 = vld [vmem:[%s3 + $0x78] sm:$0xf]
    %v267 = vld [vmem:[%s3 + $0x7c] sm:$0xf]
    %v300 = vunpack.c.l.b16 %v236
    %v301 = vunpack.c.l.b16 %v237
    %v302 = vunpack.c.l.b16 %v238
    %v303 = vunpack.c.l.b16 %v239
    %v304 = vunpack.c.l.b16 %v240
    %v305 = vunpack.c.l.b16 %v241
    %v306 = vunpack.c.l.b16 %v242
    %v307 = vunpack.c.l.b16 %v243
    %v308 = vunpack.c.l.b16 %v244
    %v309 = vunpack.c.l.b16 %v245
    %v310 = vunpack.c.l.b16 %v246
    %v311 = vunpack.c.l.b16 %v247
    %v312 = vunpack.c.l.b16 %v248
    %v313 = vunpack.c.l.b16 %v249
    %v314 = vunpack.c.l.b16 %v250
    %v315 = vunpack.c.l.b16 %v251
    %v316 = vunpack.c.l.b16 %v252
    %v317 = vunpack.c.l.b16 %v253
    %v318 = vunpack.c.l.b16 %v254
    %v319 = vunpack.c.l.b16 %v255
    %v320 = vunpack.c.l.b16 %v256
    %v321 = vunpack.c.l.b16 %v257
    %v322 = vunpack.c.l.b16 %v258
    %v323 = vunpack.c.l.b16 %v259
    %v324 = vunpack.c.l.b16 %v260
    %v325 = vunpack.c.l.b16 %v261
    %v326 = vunpack.c.l.b16 %v262
    %v327 = vunpack.c.l.b16 %v263
    %v328 = vunpack.c.l.b16 %v264
    %v329 = vunpack.c.l.b16 %v265
    %v330 = vunpack.c.l.b16 %v266
    %v331 = vunpack.c.l.b16 %v267
    %v332 = vpack.c.b16 %v301, %v300
    %v333 = vpack.c.b16 %v303, %v302
    %v334 = vpack.c.b16 %v305, %v304
    %v335 = vpack.c.b16 %v307, %v306
    %v336 = vpack.c.b16 %v309, %v308
    %v337 = vpack.c.b16 %v311, %v310
    %v338 = vpack.c.b16 %v313, %v312
    %v339 = vpack.c.b16 %v315, %v314
    %v340 = vpack.c.b16 %v317, %v316
    %v341 = vpack.c.b16 %v319, %v318
    %v342 = vpack.c.b16 %v321, %v320
    %v343 = vpack.c.b16 %v323, %v322
    %v344 = vpack.c.b16 %v325, %v324
    %v345 = vpack.c.b16 %v327, %v326
    %v346 = vpack.c.b16 %v329, %v328
    %v347 = vpack.c.b16 %v331, %v330
    %364 = vmatprep.subr.bf16.mxu0 0
    %365 = vmatpush1.bf16.msra.mxu0 %v332
    %366 = vmatprep.subr.bf16.mxu0 0
    %367 = vmatpush1.bf16.msra.mxu0 %v333
    %368 = vmatprep.subr.bf16.mxu0 0
    %369 = vmatpush1.bf16.msra.mxu0 %v334
    %370 = vmatprep.subr.bf16.mxu0 0
    %371 = vmatpush1.bf16.msra.mxu0 %v335
    %372 = vmatprep.subr.bf16.mxu0 0
    %373 = vmatpush1.bf16.msra.mxu0 %v336
    %374 = vmatprep.subr.bf16.mxu0 0
    %375 = vmatpush1.bf16.msra.mxu0 %v337
    %376 = vmatprep.subr.bf16.mxu0 0
    %377 = vmatpush1.bf16.msra.mxu0 %v338
    %378 = vmatprep.subr.bf16.mxu0 0
    %379 = vmatpush1.bf16.msra.mxu0 %v339
    %380 = vmatprep.subr.bf16.mxu0 0
    %381 = vmatpush1.bf16.msra.mxu0 %v340
    %382 = vmatprep.subr.bf16.mxu0 0
    %383 = vmatpush1.bf16.msra.mxu0 %v341
    %384 = vmatprep.subr.bf16.mxu0 0
    %385 = vmatpush1.bf16.msra.mxu0 %v342
    %386 = vmatprep.subr.bf16.mxu0 0
    %387 = vmatpush1.bf16.msra.mxu0 %v343
    %388 = vmatprep.subr.bf16.mxu0 0
    %389 = vmatpush1.bf16.msra.mxu0 %v344
    %390 = vmatprep.subr.bf16.mxu0 0
    %391 = vmatpush1.bf16.msra.mxu0 %v345
    %392 = vmatprep.subr.bf16.mxu0 0
    %393 = vmatpush1.bf16.msra.mxu0 %v346
    %394 = vmatprep.subr.bf16.mxu0 0
    %395 = vmatpush1.bf16.msra.mxu0 %v347
    %396 = vmatprep.mubr.bf16.mxu0 %v233
    %397 = vmatmul.mubr.bf16.gmra.mrb[0].mxu0 %v232
    %v398 = vpop.f32.mrb[0].mxu0
    %v399 = vadd.f32 0.0, %v398
    %v400 = vpop.f32.mrb[0].mxu0
    %v401 = vpop.f32.mrb[0].mxu0
    %v402 = vadd.f32 0.0, %v401
    %v403 = vpop.f32.mrb[0].mxu0
    %404 = vmatprep.mubr.bf16.mxu0 %v235
    %405 = vmatmul.mubr.bf16.gmra.mrb[0].mxu0 %v234
    %v406 = vpop.f32.mrb[0].mxu0
    %v407 = vadd.f32 0.0, %v406
    %v408 = vpop.f32.mrb[0].mxu0
    %v409 = vpop.f32.mrb[0].mxu0
    %v410 = vadd.f32 0.0, %v409
    %v411 = vpop.f32.mrb[0].mxu0
    %412 = vdwg.mxu0
    %v413 = vadd.f32 %v228, %v399
    %v414 = vadd.f32 %v229, %v402
    %v415 = vadd.f32 %v230, %v407
    %v416 = vadd.f32 %v231, %v410
    %417 = vst.msk [vmem:[#allocation2] sm:$0xff] %vm96, %v413
    %418 = vst.msk [vmem:[#allocation2 + $0x8] sm:$0xff] %vm96, %v414
    %419 = vst.msk [vmem:[#allocation2 + $0x10] sm:$0xff] %vm96, %v415
    %420 = vst.msk [vmem:[#allocation2 + $0x18] sm:$0xff] %vm96, %v416
    %s421 = scalar_lea.vmem %s1, 8
    %v422 = vld [vmem:[%s421] sm:$0xff]
    %v423 = vld [vmem:[%s421 + $0x20] sm:$0xff]
    %v424 = vld [vmem:[%s421 + $0x40] sm:$0xff]
    %v425 = vld [vmem:[%s421 + $0x60] sm:$0xff]
    %s426 = scalar_lea.vmem %s2, 2
    %v427 = vld [vmem:[%s426] sm:$0x3]
    %v428 = vunpack.c.l.bf16 %v427
    %v430 = vlaneseq
    %v431 = vshrl.u32 %v430, 7
    %v432 = vsub.s32 0, %v431
    %v433 = vrot.slane %v428, %v432
    %v434 = vlaneseq
    %v435 = vshrl.u32 %v434, 7
    %v436 = vsub.s32 2, %v435
    %v437 = vrot.slane %v428, %v436
    %v440 = vlaneseq
    %v441 = vshrl.u32 %v440, 7
    %v442 = vsub.s32 0, %v441
    %v443 = vrot.slane %v433, %v442
    %v444 = vlaneseq
    %v445 = vshrl.u32 %v444, 7
    %v446 = vsub.s32 0, %v445
    %v447 = vrot.slane %v437, %v446
    %v452 = vunpack.c.l.b16 %v422
    %v453 = vunpack.c.h.b16 %v422
    %v454 = vunpack.c.l.b16 %v423
    %v455 = vunpack.c.h.b16 %v423
    %v456 = vunpack.c.l.b16 %v424
    %v457 = vunpack.c.h.b16 %v424
    %v458 = vunpack.c.l.b16 %v425
    %v459 = vunpack.c.h.b16 %v425
    %v460 = vpack.c.b16 %v454, %v452
    %v461 = vpack.c.b16 %v455, %v453
    %v462 = vpack.c.b16 %v458, %v456
    %v463 = vpack.c.b16 %v459, %v457
    %468 = vmatprep.subr.bf16.mxu0 %v461
    %469 = vmatpush1.bf16.msra.mxu0 %v460
    %470 = vmatprep.subr.bf16.mxu0 %v463
    %471 = vmatpush1.bf16.msra.mxu0 %v462
    %472 = vmatprep.subr.bf16.mxu0 0
    %473 = vmatpush1.bf16.msra.mxu0 0
    %474 = vmatprep.subr.bf16.mxu0 0
    %475 = vmatpush1.bf16.msra.mxu0 0
    %476 = vmatprep.subr.bf16.mxu0 0
    %477 = vmatpush1.bf16.msra.mxu0 0
    %478 = vmatprep.subr.bf16.mxu0 0
    %479 = vmatpush1.bf16.msra.mxu0 0
    %480 = vmatprep.subr.bf16.mxu0 0
    %481 = vmatpush1.bf16.msra.mxu0 0
    %482 = vmatprep.subr.bf16.mxu0 0
    %483 = vmatpush1.bf16.msra.mxu0 0
    %484 = vmatprep.subr.bf16.mxu0 0
    %485 = vmatpush1.bf16.msra.mxu0 0
    %486 = vmatprep.subr.bf16.mxu0 0
    %487 = vmatpush1.bf16.msra.mxu0 0
    %488 = vmatprep.subr.bf16.mxu0 0
    %489 = vmatpush1.bf16.msra.mxu0 0
    %490 = vmatprep.subr.bf16.mxu0 0
    %491 = vmatpush1.bf16.msra.mxu0 0
    %492 = vmatprep.subr.bf16.mxu0 0
    %493 = vmatpush1.bf16.msra.mxu0 0
    %494 = vmatprep.subr.bf16.mxu0 0
    %495 = vmatpush1.bf16.msra.mxu0 0
    %496 = vmatprep.subr.bf16.mxu0 0
    %497 = vmatpush1.bf16.msra.mxu0 0
    %498 = vmatprep.subr.bf16.mxu0 0
    %499 = vmatpush1.bf16.msra.mxu0 0
    %500 = vmatprep.mubr.bf16.mxu0 0
    %501 = vmatmul.mubr.bf16.gmra.mrb[0].mxu0 %v98
    %v502 = vpop.f32.mrb[0].mxu0
    %v503 = vadd.f32 %v443, %v502
    %v504 = vpop.f32.mrb[0].mxu0
    %v505 = vadd.f32 %v447, %v504
    %v506 = vpop.f32.mrb[0].mxu0
    %v507 = vadd.f32 %v443, %v506
    %v508 = vpop.f32.mrb[0].mxu0
    %v509 = vadd.f32 %v447, %v508
    %510 = vmatprep.mubr.bf16.mxu0 0
    %511 = vmatmul.mubr.bf16.gmra.mrb[0].mxu0 %v101
    %v512 = vpop.f32.mrb[0].mxu0
    %v513 = vadd.f32 %v443, %v512
    %v514 = vpop.f32.mrb[0].mxu0
    %v515 = vadd.f32 %v447, %v514
    %v516 = vpop.f32.mrb[0].mxu0
    %v517 = vadd.f32 %v443, %v516
    %v518 = vpop.f32.mrb[0].mxu0
    %v519 = vadd.f32 %v447, %v518
    %520 = vdwg.mxu0
    %v521 = vmul.f32 %v503, 0.5
    %v522 = vmul.f32 %v505, 0.5
    %v523 = vmul.f32 %v507, 0.5
    %v524 = vmul.f32 %v509, 0.5
    %v525 = vmul.f32 %v513, 0.5
    %v526 = vmul.f32 %v515, 0.5
    %v527 = vmul.f32 %v517, 0.5
    %v528 = vmul.f32 %v519, 0.5
    %v529 = vmul.f32 %v503, %v503
    %v530 = vmul.f32 %v505, %v505
    %v531 = vmul.f32 %v507, %v507
    %v532 = vmul.f32 %v509, %v509
    %v533 = vmul.f32 %v513, %v513
    %v534 = vmul.f32 %v515, %v515
    %v535 = vmul.f32 %v517, %v517
    %v536 = vmul.f32 %v519, %v519
    %v537 = vmul.f32 %v529, %v503
    %v538 = vmul.f32 %v530, %v505
    %v539 = vmul.f32 %v531, %v507
    %v540 = vmul.f32 %v532, %v509
    %v541 = vmul.f32 %v533, %v513
    %v542 = vmul.f32 %v534, %v515
    %v543 = vmul.f32 %v535, %v517
    %v544 = vmul.f32 %v536, %v519
    %v545 = vmul.f32 %v537, 0.044715
    %v546 = vmul.f32 %v538, 0.044715
    %v547 = vmul.f32 %v539, 0.044715
    %v548 = vmul.f32 %v540, 0.044715
    %v549 = vmul.f32 %v541, 0.044715
    %v550 = vmul.f32 %v542, 0.044715
    %v551 = vmul.f32 %v543, 0.044715
    %v552 = vmul.f32 %v544, 0.044715
    %v553 = vadd.f32 %v503, %v545
    %v554 = vadd.f32 %v505, %v546
    %v555 = vadd.f32 %v507, %v547
    %v556 = vadd.f32 %v509, %v548
    %v557 = vadd.f32 %v513, %v549
    %v558 = vadd.f32 %v515, %v550
    %v559 = vadd.f32 %v517, %v551
    %v560 = vadd.f32 %v519, %v552
    %v561 = vmul.f32 %v553, 0.7978846
    %v562 = vmul.f32 %v554, 0.7978846
    %v563 = vmul.f32 %v555, 0.7978846
    %v564 = vmul.f32 %v556, 0.7978846
    %v565 = vmul.f32 %v557, 0.7978846
    %v566 = vmul.f32 %v558, 0.7978846
    %v567 = vmul.f32 %v559, 0.7978846
    %v568 = vmul.f32 %v560, 0.7978846
    %v569 = vtanh.pop %v561
    %v570 = vtanh.pop %v562
    %v571 = vtanh.pop %v563
    %v572 = vtanh.pop %v564
    %v573 = vtanh.pop %v565
    %v574 = vtanh.pop %v566
    %v575 = vtanh.pop %v567
    %v576 = vtanh.pop %v568
    %v577 = vadd.f32 %v569, 1.0
    %v578 = vadd.f32 %v570, 1.0
    %v579 = vadd.f32 %v571, 1.0
    %v580 = vadd.f32 %v572, 1.0
    %v581 = vadd.f32 %v573, 1.0
    %v582 = vadd.f32 %v574, 1.0
    %v583 = vadd.f32 %v575, 1.0
    %v584 = vadd.f32 %v576, 1.0
    %v585 = vmul.f32 %v521, %v577
    %v586 = vmul.f32 %v522, %v578
    %v587 = vmul.f32 %v523, %v579
    %v588 = vmul.f32 %v524, %v580
    %v589 = vmul.f32 %v525, %v581
    %v590 = vmul.f32 %v526, %v582
    %v591 = vmul.f32 %v527, %v583
    %v592 = vmul.f32 %v528, %v584
    %v593 = vld [vmem:[#allocation2] sm:$0xff]
    %v594 = vld [vmem:[#allocation2 + $0x8] sm:$0xff]
    %v595 = vld [vmem:[#allocation2 + $0x10] sm:$0xff]
    %v596 = vld [vmem:[#allocation2 + $0x18] sm:$0xff]
    %v597 = vpack.c.bf16 %v587, %v585
    %v598 = vpack.c.bf16 %v588, %v586
    %v599 = vpack.c.bf16 %v591, %v589
    %v600 = vpack.c.bf16 %v592, %v590
    %s601 = scalar_lea.vmem %s3, 128
    %v602 = vld [vmem:[%s601] sm:$0xf]
    %v603 = vld [vmem:[%s601 + $0x4] sm:$0xf]
    %v604 = vld [vmem:[%s601 + $0x8] sm:$0xf]
    %v605 = vld [vmem:[%s601 + $0xc] sm:$0xf]
    %v606 = vld [vmem:[%s601 + $0x10] sm:$0xf]
    %v607 = vld [vmem:[%s601 + $0x14] sm:$0xf]
    %v608 = vld [vmem:[%s601 + $0x18] sm:$0xf]
    %v609 = vld [vmem:[%s601 + $0x1c] sm:$0xf]
    %v610 = vld [vmem:[%s601 + $0x20] sm:$0xf]
    %v611 = vld [vmem:[%s601 + $0x24] sm:$0xf]
    %v612 = vld [vmem:[%s601 + $0x28] sm:$0xf]
    %v613 = vld [vmem:[%s601 + $0x2c] sm:$0xf]
    %v614 = vld [vmem:[%s601 + $0x30] sm:$0xf]
    %v615 = vld [vmem:[%s601 + $0x34] sm:$0xf]
    %v616 = vld [vmem:[%s601 + $0x38] sm:$0xf]
    %v617 = vld [vmem:[%s601 + $0x3c] sm:$0xf]
    %v618 = vld [vmem:[%s601 + $0x40] sm:$0xf]
    %v619 = vld [vmem:[%s601 + $0x44] sm:$0xf]
    %v620 = vld [vmem:[%s601 + $0x48] sm:$0xf]
    %v621 = vld [vmem:[%s601 + $0x4c] sm:$0xf]
    %v622 = vld [vmem:[%s601 + $0x50] sm:$0xf]
    %v623 = vld [vmem:[%s601 + $0x54] sm:$0xf]
    %v624 = vld [vmem:[%s601 + $0x58] sm:$0xf]
    %v625 = vld [vmem:[%s601 + $0x5c] sm:$0xf]
    %v626 = vld [vmem:[%s601 + $0x60] sm:$0xf]
    %v627 = vld [vmem:[%s601 + $0x64] sm:$0xf]
    %v628 = vld [vmem:[%s601 + $0x68] sm:$0xf]
    %v629 = vld [vmem:[%s601 + $0x6c] sm:$0xf]
    %v630 = vld [vmem:[%s601 + $0x70] sm:$0xf]
    %v631 = vld [vmem:[%s601 + $0x74] sm:$0xf]
    %v632 = vld [vmem:[%s601 + $0x78] sm:$0xf]
    %v633 = vld [vmem:[%s601 + $0x7c] sm:$0xf]
    %v666 = vunpack.c.l.b16 %v602
    %v667 = vunpack.c.l.b16 %v603
    %v668 = vunpack.c.l.b16 %v604
    %v669 = vunpack.c.l.b16 %v605
    %v670 = vunpack.c.l.b16 %v606
    %v671 = vunpack.c.l.b16 %v607
    %v672 = vunpack.c.l.b16 %v608
    %v673 = vunpack.c.l.b16 %v609
    %v674 = vunpack.c.l.b16 %v610
    %v675 = vunpack.c.l.b16 %v611
    %v676 = vunpack.c.l.b16 %v612
    %v677 = vunpack.c.l.b16 %v613
    %v678 = vunpack.c.l.b16 %v614
    %v679 = vunpack.c.l.b16 %v615
    %v680 = vunpack.c.l.b16 %v616
    %v681 = vunpack.c.l.b16 %v617
    %v682 = vunpack.c.l.b16 %v618
    %v683 = vunpack.c.l.b16 %v619
    %v684 = vunpack.c.l.b16 %v620
    %v685 = vunpack.c.l.b16 %v621
    %v686 = vunpack.c.l.b16 %v622
    %v687 = vunpack.c.l.b16 %v623
    %v688 = vunpack.c.l.b16 %v624
    %v689 = vunpack.c.l.b16 %v625
    %v690 = vunpack.c.l.b16 %v626
    %v691 = vunpack.c.l.b16 %v627
    %v692 = vunpack.c.l.b16 %v628
    %v693 = vunpack.c.l.b16 %v629
    %v694 = vunpack.c.l.b16 %v630
    %v695 = vunpack.c.l.b16 %v631
    %v696 = vunpack.c.l.b16 %v632
    %v697 = vunpack.c.l.b16 %v633
    %v698 = vpack.c.b16 %v667, %v666
    %v699 = vpack.c.b16 %v669, %v668
    %v700 = vpack.c.b16 %v671, %v670
    %v701 = vpack.c.b16 %v673, %v672
    %v702 = vpack.c.b16 %v675, %v674
    %v703 = vpack.c.b16 %v677, %v676
    %v704 = vpack.c.b16 %v679, %v678
    %v705 = vpack.c.b16 %v681, %v680
    %v706 = vpack.c.b16 %v683, %v682
    %v707 = vpack.c.b16 %v685, %v684
    %v708 = vpack.c.b16 %v687, %v686
    %v709 = vpack.c.b16 %v689, %v688
    %v710 = vpack.c.b16 %v691, %v690
    %v711 = vpack.c.b16 %v693, %v692
    %v712 = vpack.c.b16 %v695, %v694
    %v713 = vpack.c.b16 %v697, %v696
    %730 = vmatprep.subr.bf16.mxu0 0
    %731 = vmatpush1.bf16.msra.mxu0 %v698
    %732 = vmatprep.subr.bf16.mxu0 0
    %733 = vmatpush1.bf16.msra.mxu0 %v699
    %734 = vmatprep.subr.bf16.mxu0 0
    %735 = vmatpush1.bf16.msra.mxu0 %v700
    %736 = vmatprep.subr.bf16.mxu0 0
    %737 = vmatpush1.bf16.msra.mxu0 %v701
    %738 = vmatprep.subr.bf16.mxu0 0
    %739 = vmatpush1.bf16.msra.mxu0 %v702
    %740 = vmatprep.subr.bf16.mxu0 0
    %741 = vmatpush1.bf16.msra.mxu0 %v703
    %742 = vmatprep.subr.bf16.mxu0 0
    %743 = vmatpush1.bf16.msra.mxu0 %v704
    %744 = vmatprep.subr.bf16.mxu0 0
    %745 = vmatpush1.bf16.msra.mxu0 %v705
    %746 = vmatprep.subr.bf16.mxu0 0
    %747 = vmatpush1.bf16.msra.mxu0 %v706
    %748 = vmatprep.subr.bf16.mxu0 0
    %749 = vmatpush1.bf16.msra.mxu0 %v707
    %750 = vmatprep.subr.bf16.mxu0 0
    %751 = vmatpush1.bf16.msra.mxu0 %v708
    %752 = vmatprep.subr.bf16.mxu0 0
    %753 = vmatpush1.bf16.msra.mxu0 %v709
    %754 = vmatprep.subr.bf16.mxu0 0
    %755 = vmatpush1.bf16.msra.mxu0 %v710
    %756 = vmatprep.subr.bf16.mxu0 0
    %757 = vmatpush1.bf16.msra.mxu0 %v711
    %758 = vmatprep.subr.bf16.mxu0 0
    %759 = vmatpush1.bf16.msra.mxu0 %v712
    %760 = vmatprep.subr.bf16.mxu0 0
    %761 = vmatpush1.bf16.msra.mxu0 %v713
    %762 = vmatprep.mubr.bf16.mxu0 %v598
    %763 = vmatmul.mubr.bf16.gmra.mrb[0].mxu0 %v597
    %v764 = vpop.f32.mrb[0].mxu0
    %v765 = vadd.f32 0.0, %v764
    %v766 = vpop.f32.mrb[0].mxu0
    %v767 = vpop.f32.mrb[0].mxu0
    %v768 = vadd.f32 0.0, %v767
    %v769 = vpop.f32.mrb[0].mxu0
    %770 = vmatprep.mubr.bf16.mxu0 %v600
    %771 = vmatmul.mubr.bf16.gmra.mrb[0].mxu0 %v599
    %v772 = vpop.f32.mrb[0].mxu0
    %v773 = vadd.f32 0.0, %v772
    %v774 = vpop.f32.mrb[0].mxu0
    %v775 = vpop.f32.mrb[0].mxu0
    %v776 = vadd.f32 0.0, %v775
    %v777 = vpop.f32.mrb[0].mxu0
    %778 = vdwg.mxu0
    %v779 = vadd.f32 %v593, %v765
    %v780 = vadd.f32 %v594, %v768
    %v781 = vadd.f32 %v595, %v773
    %v782 = vadd.f32 %v596, %v776
    %783 = vst.msk [vmem:[#allocation2] sm:$0xff] %vm96, %v779
    %784 = vst.msk [vmem:[#allocation2 + $0x8] sm:$0xff] %vm96, %v780
    %785 = vst.msk [vmem:[#allocation2 + $0x10] sm:$0xff] %vm96, %v781
    %786 = vst.msk [vmem:[#allocation2 + $0x18] sm:$0xff] %vm96, %v782
    %s787 = scalar_lea.vmem %s1, 16
    %v788 = vld [vmem:[%s787] sm:$0xff]
    %v789 = vld [vmem:[%s787 + $0x20] sm:$0xff]
    %v790 = vld [vmem:[%s787 + $0x40] sm:$0xff]
    %v791 = vld [vmem:[%s787 + $0x60] sm:$0xff]
    %s792 = scalar_lea.vmem %s2, 4
    %v793 = vld [vmem:[%s792] sm:$0x3]
    %v794 = vunpack.c.l.bf16 %v793
    %v796 = vlaneseq
    %v797 = vshrl.u32 %v796, 7
    %v798 = vsub.s32 0, %v797
    %v799 = vrot.slane %v794, %v798
    %v800 = vlaneseq
    %v801 = vshrl.u32 %v800, 7
    %v802 = vsub.s32 2, %v801
    %v803 = vrot.slane %v794, %v802
    %v806 = vlaneseq
    %v807 = vshrl.u32 %v806, 7
    %v808 = vsub.s32 0, %v807
    %v809 = vrot.slane %v799, %v808
    %v810 = vlaneseq
    %v811 = vshrl.u32 %v810, 7
    %v812 = vsub.s32 0, %v811
    %v813 = vrot.slane %v803, %v812
    %v818 = vunpack.c.l.b16 %v788
    %v819 = vunpack.c.h.b16 %v788
    %v820 = vunpack.c.l.b16 %v789
    %v821 = vunpack.c.h.b16 %v789
    %v822 = vunpack.c.l.b16 %v790
    %v823 = vunpack.c.h.b16 %v790
    %v824 = vunpack.c.l.b16 %v791
    %v825 = vunpack.c.h.b16 %v791
    %v826 = vpack.c.b16 %v820, %v818
    %v827 = vpack.c.b16 %v821, %v819
    %v828 = vpack.c.b16 %v824, %v822
    %v829 = vpack.c.b16 %v825, %v823
    %834 = vmatprep.subr.bf16.mxu0 %v827
    %835 = vmatpush1.bf16.msra.mxu0 %v826
    %836 = vmatprep.subr.bf16.mxu0 %v829
    %837 = vmatpush1.bf16.msra.mxu0 %v828
    %838 = vmatprep.subr.bf16.mxu0 0
    %839 = vmatpush1.bf16.msra.mxu0 0
    %840 = vmatprep.subr.bf16.mxu0 0
    %841 = vmatpush1.bf16.msra.mxu0 0
    %842 = vmatprep.subr.bf16.mxu0 0
    %843 = vmatpush1.bf16.msra.mxu0 0
    %844 = vmatprep.subr.bf16.mxu0 0
    %845 = vmatpush1.bf16.msra.mxu0 0
    %846 = vmatprep.subr.bf16.mxu0 0
    %847 = vmatpush1.bf16.msra.mxu0 0
    %848 = vmatprep.subr.bf16.mxu0 0
    %849 = vmatpush1.bf16.msra.mxu0 0
    %850 = vmatprep.subr.bf16.mxu0 0
    %851 = vmatpush1.bf16.msra.mxu0 0
    %852 = vmatprep.subr.bf16.mxu0 0
    %853 = vmatpush1.bf16.msra.mxu0 0
    %854 = vmatprep.subr.bf16.mxu0 0
    %855 = vmatpush1.bf16.msra.mxu0 0
    %856 = vmatprep.subr.bf16.mxu0 0
    %857 = vmatpush1.bf16.msra.mxu0 0
    %858 = vmatprep.subr.bf16.mxu0 0
    %859 = vmatpush1.bf16.msra.mxu0 0
    %860 = vmatprep.subr.bf16.mxu0 0
    %861 = vmatpush1.bf16.msra.mxu0 0
    %862 = vmatprep.subr.bf16.mxu0 0
    %863 = vmatpush1.bf16.msra.mxu0 0
    %864 = vmatprep.subr.bf16.mxu0 0
    %865 = vmatpush1.bf16.msra.mxu0 0
    %866 = vmatprep.mubr.bf16.mxu0 0
    %867 = vmatmul.mubr.bf16.gmra.mrb[0].mxu0 %v98
    %v868 = vpop.f32.mrb[0].mxu0
    %v869 = vadd.f32 %v809, %v868
    %v870 = vpop.f32.mrb[0].mxu0
    %v871 = vadd.f32 %v813, %v870
    %v872 = vpop.f32.mrb[0].mxu0
    %v873 = vadd.f32 %v809, %v872
    %v874 = vpop.f32.mrb[0].mxu0
    %v875 = vadd.f32 %v813, %v874
    %876 = vmatprep.mubr.bf16.mxu0 0
    %877 = vmatmul.mubr.bf16.gmra.mrb[0].mxu0 %v101
    %v878 = vpop.f32.mrb[0].mxu0
    %v879 = vadd.f32 %v809, %v878
    %v880 = vpop.f32.mrb[0].mxu0
    %v881 = vadd.f32 %v813, %v880
    %v882 = vpop.f32.mrb[0].mxu0
    %v883 = vadd.f32 %v809, %v882
    %v884 = vpop.f32.mrb[0].mxu0
    %v885 = vadd.f32 %v813, %v884
    %886 = vdwg.mxu0
    %v887 = vmul.f32 %v869, 0.5
    %v888 = vmul.f32 %v871, 0.5
    %v889 = vmul.f32 %v873, 0.5
    %v890 = vmul.f32 %v875, 0.5
    %v891 = vmul.f32 %v879, 0.5
    %v892 = vmul.f32 %v881, 0.5
    %v893 = vmul.f32 %v883, 0.5
    %v894 = vmul.f32 %v885, 0.5
    %v895 = vmul.f32 %v869, %v869
    %v896 = vmul.f32 %v871, %v871
    %v897 = vmul.f32 %v873, %v873
    %v898 = vmul.f32 %v875, %v875
    %v899 = vmul.f32 %v879, %v879
    %v900 = vmul.f32 %v881, %v881
    %v901 = vmul.f32 %v883, %v883
    %v902 = vmul.f32 %v885, %v885
    %v903 = vmul.f32 %v895, %v869
    %v904 = vmul.f32 %v896, %v871
    %v905 = vmul.f32 %v897, %v873
    %v906 = vmul.f32 %v898, %v875
    %v907 = vmul.f32 %v899, %v879
    %v908 = vmul.f32 %v900, %v881
    %v909 = vmul.f32 %v901, %v883
    %v910 = vmul.f32 %v902, %v885
    %v911 = vmul.f32 %v903, 0.044715
    %v912 = vmul.f32 %v904, 0.044715
    %v913 = vmul.f32 %v905, 0.044715
    %v914 = vmul.f32 %v906, 0.044715
    %v915 = vmul.f32 %v907, 0.044715
    %v916 = vmul.f32 %v908, 0.044715
    %v917 = vmul.f32 %v909, 0.044715
    %v918 = vmul.f32 %v910, 0.044715
    %v919 = vadd.f32 %v869, %v911
    %v920 = vadd.f32 %v871, %v912
    %v921 = vadd.f32 %v873, %v913
    %v922 = vadd.f32 %v875, %v914
    %v923 = vadd.f32 %v879, %v915
    %v924 = vadd.f32 %v881, %v916
    %v925 = vadd.f32 %v883, %v917
    %v926 = vadd.f32 %v885, %v918
    %v927 = vmul.f32 %v919, 0.7978846
    %v928 = vmul.f32 %v920, 0.7978846
    %v929 = vmul.f32 %v921, 0.7978846
    %v930 = vmul.f32 %v922, 0.7978846
    %v931 = vmul.f32 %v923, 0.7978846
    %v932 = vmul.f32 %v924, 0.7978846
    %v933 = vmul.f32 %v925, 0.7978846
    %v934 = vmul.f32 %v926, 0.7978846
    %v935 = vtanh.pop %v927
    %v936 = vtanh.pop %v928
    %v937 = vtanh.pop %v929
    %v938 = vtanh.pop %v930
    %v939 = vtanh.pop %v931
    %v940 = vtanh.pop %v932
    %v941 = vtanh.pop %v933
    %v942 = vtanh.pop %v934
    %v943 = vadd.f32 %v935, 1.0
    %v944 = vadd.f32 %v936, 1.0
    %v945 = vadd.f32 %v937, 1.0
    %v946 = vadd.f32 %v938, 1.0
    %v947 = vadd.f32 %v939, 1.0
    %v948 = vadd.f32 %v940, 1.0
    %v949 = vadd.f32 %v941, 1.0
    %v950 = vadd.f32 %v942, 1.0
    %v951 = vmul.f32 %v887, %v943
    %v952 = vmul.f32 %v888, %v944
    %v953 = vmul.f32 %v889, %v945
    %v954 = vmul.f32 %v890, %v946
    %v955 = vmul.f32 %v891, %v947
    %v956 = vmul.f32 %v892, %v948
    %v957 = vmul.f32 %v893, %v949
    %v958 = vmul.f32 %v894, %v950
    %v959 = vld [vmem:[#allocation2] sm:$0xff]
    %v960 = vld [vmem:[#allocation2 + $0x8] sm:$0xff]
    %v961 = vld [vmem:[#allocation2 + $0x10] sm:$0xff]
    %v962 = vld [vmem:[#allocation2 + $0x18] sm:$0xff]
    %v963 = vpack.c.bf16 %v953, %v951
    %v964 = vpack.c.bf16 %v954, %v952
    %v965 = vpack.c.bf16 %v957, %v955
    %v966 = vpack.c.bf16 %v958, %v956
    %s967 = scalar_lea.vmem %s3, 256
    %v968 = vld [vmem:[%s967] sm:$0xf]
    %v969 = vld [vmem:[%s967 + $0x4] sm:$0xf]
    %v970 = vld [vmem:[%s967 + $0x8] sm:$0xf]
    %v971 = vld [vmem:[%s967 + $0xc] sm:$0xf]
    %v972 = vld [vmem:[%s967 + $0x10] sm:$0xf]
    %v973 = vld [vmem:[%s967 + $0x14] sm:$0xf]
    %v974 = vld [vmem:[%s967 + $0x18] sm:$0xf]
    %v975 = vld [vmem:[%s967 + $0x1c] sm:$0xf]
    %v976 = vld [vmem:[%s967 + $0x20] sm:$0xf]
    %v977 = vld [vmem:[%s967 + $0x24] sm:$0xf]
    %v978 = vld [vmem:[%s967 + $0x28] sm:$0xf]
    %v979 = vld [vmem:[%s967 + $0x2c] sm:$0xf]
    %v980 = vld [vmem:[%s967 + $0x30] sm:$0xf]
    %v981 = vld [vmem:[%s967 + $0x34] sm:$0xf]
    %v982 = vld [vmem:[%s967 + $0x38] sm:$0xf]
    %v983 = vld [vmem:[%s967 + $0x3c] sm:$0xf]
    %v984 = vld [vmem:[%s967 + $0x40] sm:$0xf]
    %v985 = vld [vmem:[%s967 + $0x44] sm:$0xf]
    %v986 = vld [vmem:[%s967 + $0x48] sm:$0xf]
    %v987 = vld [vmem:[%s967 + $0x4c] sm:$0xf]
    %v988 = vld [vmem:[%s967 + $0x50] sm:$0xf]
    %v989 = vld [vmem:[%s967 + $0x54] sm:$0xf]
    %v990 = vld [vmem:[%s967 + $0x58] sm:$0xf]
    %v991 = vld [vmem:[%s967 + $0x5c] sm:$0xf]
    %v992 = vld [vmem:[%s967 + $0x60] sm:$0xf]
    %v993 = vld [vmem:[%s967 + $0x64] sm:$0xf]
    %v994 = vld [vmem:[%s967 + $0x68] sm:$0xf]
    %v995 = vld [vmem:[%s967 + $0x6c] sm:$0xf]
    %v996 = vld [vmem:[%s967 + $0x70] sm:$0xf]
    %v997 = vld [vmem:[%s967 + $0x74] sm:$0xf]
    %v998 = vld [vmem:[%s967 + $0x78] sm:$0xf]
    %v999 = vld [vmem:[%s967 + $0x7c] sm:$0xf]
    %v1032 = vunpack.c.l.b16 %v968
    %v1033 = vunpack.c.l.b16 %v969
    %v1034 = vunpack.c.l.b16 %v970
    %v1035 = vunpack.c.l.b16 %v971
    %v1036 = vunpack.c.l.b16 %v972
    %v1037 = vunpack.c.l.b16 %v973
    %v1038 = vunpack.c.l.b16 %v974
    %v1039 = vunpack.c.l.b16 %v975
    %v1040 = vunpack.c.l.b16 %v976
    %v1041 = vunpack.c.l.b16 %v977
    %v1042 = vunpack.c.l.b16 %v978
    %v1043 = vunpack.c.l.b16 %v979
    %v1044 = vunpack.c.l.b16 %v980
    %v1045 = vunpack.c.l.b16 %v981
    %v1046 = vunpack.c.l.b16 %v982
    %v1047 = vunpack.c.l.b16 %v983
    %v1048 = vunpack.c.l.b16 %v984
    %v1049 = vunpack.c.l.b16 %v985
    %v1050 = vunpack.c.l.b16 %v986
    %v1051 = vunpack.c.l.b16 %v987
    %v1052 = vunpack.c.l.b16 %v988
    %v1053 = vunpack.c.l.b16 %v989
    %v1054 = vunpack.c.l.b16 %v990
    %v1055 = vunpack.c.l.b16 %v991
    %v1056 = vunpack.c.l.b16 %v992
    %v1057 = vunpack.c.l.b16 %v993
    %v1058 = vunpack.c.l.b16 %v994
    %v1059 = vunpack.c.l.b16 %v995
    %v1060 = vunpack.c.l.b16 %v996
    %v1061 = vunpack.c.l.b16 %v997
    %v1062 = vunpack.c.l.b16 %v998
    %v1063 = vunpack.c.l.b16 %v999
    %v1064 = vpack.c.b16 %v1033, %v1032
    %v1065 = vpack.c.b16 %v1035, %v1034
    %v1066 = vpack.c.b16 %v1037, %v1036
    %v1067 = vpack.c.b16 %v1039, %v1038
    %v1068 = vpack.c.b16 %v1041, %v1040
    %v1069 = vpack.c.b16 %v1043, %v1042
    %v1070 = vpack.c.b16 %v1045, %v1044
    %v1071 = vpack.c.b16 %v1047, %v1046
    %v1072 = vpack.c.b16 %v1049, %v1048
    %v1073 = vpack.c.b16 %v1051, %v1050
    %v1074 = vpack.c.b16 %v1053, %v1052
    %v1075 = vpack.c.b16 %v1055, %v1054
    %v1076 = vpack.c.b16 %v1057, %v1056
    %v1077 = vpack.c.b16 %v1059, %v1058
    %v1078 = vpack.c.b16 %v1061, %v1060
    %v1079 = vpack.c.b16 %v1063, %v1062
    %1096 = vmatprep.subr.bf16.mxu0 0
    %1097 = vmatpush1.bf16.msra.mxu0 %v1064
    %1098 = vmatprep.subr.bf16.mxu0 0
    %1099 = vmatpush1.bf16.msra.mxu0 %v1065
    %1100 = vmatprep.subr.bf16.mxu0 0
    %1101 = vmatpush1.bf16.msra.mxu0 %v1066
    %1102 = vmatprep.subr.bf16.mxu0 0
    %1103 = vmatpush1.bf16.msra.mxu0 %v1067
    %1104 = vmatprep.subr.bf16.mxu0 0
    %1105 = vmatpush1.bf16.msra.mxu0 %v1068
    %1106 = vmatprep.subr.bf16.mxu0 0
    %1107 = vmatpush1.bf16.msra.mxu0 %v1069
    %1108 = vmatprep.subr.bf16.mxu0 0
    %1109 = vmatpush1.bf16.msra.mxu0 %v1070
    %1110 = vmatprep.subr.bf16.mxu0 0
    %1111 = vmatpush1.bf16.msra.mxu0 %v1071
    %1112 = vmatprep.subr.bf16.mxu0 0
    %1113 = vmatpush1.bf16.msra.mxu0 %v1072
    %1114 = vmatprep.subr.bf16.mxu0 0
    %1115 = vmatpush1.bf16.msra.mxu0 %v1073
    %1116 = vmatprep.subr.bf16.mxu0 0
    %1117 = vmatpush1.bf16.msra.mxu0 %v1074
    %1118 = vmatprep.subr.bf16.mxu0 0
    %1119 = vmatpush1.bf16.msra.mxu0 %v1075
    %1120 = vmatprep.subr.bf16.mxu0 0
    %1121 = vmatpush1.bf16.msra.mxu0 %v1076
    %1122 = vmatprep.subr.bf16.mxu0 0
    %1123 = vmatpush1.bf16.msra.mxu0 %v1077
    %1124 = vmatprep.subr.bf16.mxu0 0
    %1125 = vmatpush1.bf16.msra.mxu0 %v1078
    %1126 = vmatprep.subr.bf16.mxu0 0
    %1127 = vmatpush1.bf16.msra.mxu0 %v1079
    %1128 = vmatprep.mubr.bf16.mxu0 %v964
    %1129 = vmatmul.mubr.bf16.gmra.mrb[0].mxu0 %v963
    %v1130 = vpop.f32.mrb[0].mxu0
    %v1131 = vadd.f32 0.0, %v1130
    %v1132 = vpop.f32.mrb[0].mxu0
    %v1133 = vpop.f32.mrb[0].mxu0
    %v1134 = vadd.f32 0.0, %v1133
    %v1135 = vpop.f32.mrb[0].mxu0
    %1136 = vmatprep.mubr.bf16.mxu0 %v966
    %1137 = vmatmul.mubr.bf16.gmra.mrb[0].mxu0 %v965
    %v1138 = vpop.f32.mrb[0].mxu0
    %v1139 = vadd.f32 0.0, %v1138
    %v1140 = vpop.f32.mrb[0].mxu0
    %v1141 = vpop.f32.mrb[0].mxu0
    %v1142 = vadd.f32 0.0, %v1141
    %v1143 = vpop.f32.mrb[0].mxu0
    %1144 = vdwg.mxu0
    %v1145 = vadd.f32 %v959, %v1131
    %v1146 = vadd.f32 %v960, %v1134
    %v1147 = vadd.f32 %v961, %v1139
    %v1148 = vadd.f32 %v962, %v1142
    %1149 = vst.msk [vmem:[#allocation2] sm:$0xff] %vm96, %v1145
    %1150 = vst.msk [vmem:[#allocation2 + $0x8] sm:$0xff] %vm96, %v1146
    %1151 = vst.msk [vmem:[#allocation2 + $0x10] sm:$0xff] %vm96, %v1147
    %1152 = vst.msk [vmem:[#allocation2 + $0x18] sm:$0xff] %vm96, %v1148
    %s1153 = scalar_lea.vmem %s1, 24
    %v1154 = vld [vmem:[%s1153] sm:$0xff]
    %v1155 = vld [vmem:[%s1153 + $0x20] sm:$0xff]
    %v1156 = vld [vmem:[%s1153 + $0x40] sm:$0xff]
    %v1157 = vld [vmem:[%s1153 + $0x60] sm:$0xff]
    %s1158 = scalar_lea.vmem %s2, 6
    %v1159 = vld [vmem:[%s1158] sm:$0x3]
    %v1160 = vunpack.c.l.bf16 %v1159
    %v1162 = vlaneseq
    %v1163 = vshrl.u32 %v1162, 7
    %v1164 = vsub.s32 0, %v1163
    %v1165 = vrot.slane %v1160, %v1164
    %v1166 = vlaneseq
    %v1167 = vshrl.u32 %v1166, 7
    %v1168 = vsub.s32 2, %v1167
    %v1169 = vrot.slane %v1160, %v1168
    %v1172 = vlaneseq
    %v1173 = vshrl.u32 %v1172, 7
    %v1174 = vsub.s32 0, %v1173
    %v1175 = vrot.slane %v1165, %v1174
    %v1176 = vlaneseq
    %v1177 = vshrl.u32 %v1176, 7
    %v1178 = vsub.s32 0, %v1177
    %v1179 = vrot.slane %v1169, %v1178
    %v1184 = vunpack.c.l.b16 %v1154
    %v1185 = vunpack.c.h.b16 %v1154
    %v1186 = vunpack.c.l.b16 %v1155
    %v1187 = vunpack.c.h.b16 %v1155
    %v1188 = vunpack.c.l.b16 %v1156
    %v1189 = vunpack.c.h.b16 %v1156
    %v1190 = vunpack.c.l.b16 %v1157
    %v1191 = vunpack.c.h.b16 %v1157
    %v1192 = vpack.c.b16 %v1186, %v1184
    %v1193 = vpack.c.b16 %v1187, %v1185
    %v1194 = vpack.c.b16 %v1190, %v1188
    %v1195 = vpack.c.b16 %v1191, %v1189
    %1200 = vmatprep.subr.bf16.mxu0 %v1193
    %1201 = vmatpush1.bf16.msra.mxu0 %v1192
    %1202 = vmatprep.subr.bf16.mxu0 %v1195
    %1203 = vmatpush1.bf16.msra.mxu0 %v1194
    %1204 = vmatprep.subr.bf16.mxu0 0
    %1205 = vmatpush1.bf16.msra.mxu0 0
    %1206 = vmatprep.subr.bf16.mxu0 0
    %1207 = vmatpush1.bf16.msra.mxu0 0
    %1208 = vmatprep.subr.bf16.mxu0 0
    %1209 = vmatpush1.bf16.msra.mxu0 0
    %1210 = vmatprep.subr.bf16.mxu0 0
    %1211 = vmatpush1.bf16.msra.mxu0 0
    %1212 = vmatprep.subr.bf16.mxu0 0
    %1213 = vmatpush1.bf16.msra.mxu0 0
    %1214 = vmatprep.subr.bf16.mxu0 0
    %1215 = vmatpush1.bf16.msra.mxu0 0
    %1216 = vmatprep.subr.bf16.mxu0 0
    %1217 = vmatpush1.bf16.msra.mxu0 0
    %1218 = vmatprep.subr.bf16.mxu0 0
    %1219 = vmatpush1.bf16.msra.mxu0 0
    %1220 = vmatprep.subr.bf16.mxu0 0
    %1221 = vmatpush1.bf16.msra.mxu0 0
    %1222 = vmatprep.subr.bf16.mxu0 0
    %1223 = vmatpush1.bf16.msra.mxu0 0
    %1224 = vmatprep.subr.bf16.mxu0 0
    %1225 = vmatpush1.bf16.msra.mxu0 0
    %1226 = vmatprep.subr.bf16.mxu0 0
    %1227 = vmatpush1.bf16.msra.mxu0 0
    %1228 = vmatprep.subr.bf16.mxu0 0
    %1229 = vmatpush1.bf16.msra.mxu0 0
    %1230 = vmatprep.subr.bf16.mxu0 0
    %1231 = vmatpush1.bf16.msra.mxu0 0
    %1232 = vmatprep.mubr.bf16.mxu0 0
    %1233 = vmatmul.mubr.bf16.gmra.mrb[0].mxu0 %v98
    %v1234 = vpop.f32.mrb[0].mxu0
    %v1235 = vadd.f32 %v1175, %v1234
    %v1236 = vpop.f32.mrb[0].mxu0
    %v1237 = vadd.f32 %v1179, %v1236
    %v1238 = vpop.f32.mrb[0].mxu0
    %v1239 = vadd.f32 %v1175, %v1238
    %v1240 = vpop.f32.mrb[0].mxu0
    %v1241 = vadd.f32 %v1179, %v1240
    %1242 = vmatprep.mubr.bf16.mxu0 0
    %1243 = vmatmul.mubr.bf16.gmra.mrb[0].mxu0 %v101
    %v1244 = vpop.f32.mrb[0].mxu0
    %v1245 = vadd.f32 %v1175, %v1244
    %v1246 = vpop.f32.mrb[0].mxu0
    %v1247 = vadd.f32 %v1179, %v1246
    %v1248 = vpop.f32.mrb[0].mxu0
    %v1249 = vadd.f32 %v1175, %v1248
    %v1250 = vpop.f32.mrb[0].mxu0
    %v1251 = vadd.f32 %v1179, %v1250
    %1252 = vdwg.mxu0
    %v1253 = vmul.f32 %v1235, 0.5
    %v1254 = vmul.f32 %v1237, 0.5
    %v1255 = vmul.f32 %v1239, 0.5
    %v1256 = vmul.f32 %v1241, 0.5
    %v1257 = vmul.f32 %v1245, 0.5
    %v1258 = vmul.f32 %v1247, 0.5
    %v1259 = vmul.f32 %v1249, 0.5
    %v1260 = vmul.f32 %v1251, 0.5
    %v1261 = vmul.f32 %v1235, %v1235
    %v1262 = vmul.f32 %v1237, %v1237
    %v1263 = vmul.f32 %v1239, %v1239
    %v1264 = vmul.f32 %v1241, %v1241
    %v1265 = vmul.f32 %v1245, %v1245
    %v1266 = vmul.f32 %v1247, %v1247
    %v1267 = vmul.f32 %v1249, %v1249
    %v1268 = vmul.f32 %v1251, %v1251
    %v1269 = vmul.f32 %v1261, %v1235
    %v1270 = vmul.f32 %v1262, %v1237
    %v1271 = vmul.f32 %v1263, %v1239
    %v1272 = vmul.f32 %v1264, %v1241
    %v1273 = vmul.f32 %v1265, %v1245
    %v1274 = vmul.f32 %v1266, %v1247
    %v1275 = vmul.f32 %v1267, %v1249
    %v1276 = vmul.f32 %v1268, %v1251
    %v1277 = vmul.f32 %v1269, 0.044715
    %v1278 = vmul.f32 %v1270, 0.044715
    %v1279 = vmul.f32 %v1271, 0.044715
    %v1280 = vmul.f32 %v1272, 0.044715
    %v1281 = vmul.f32 %v1273, 0.044715
    %v1282 = vmul.f32 %v1274, 0.044715
    %v1283 = vmul.f32 %v1275, 0.044715
    %v1284 = vmul.f32 %v1276, 0.044715
    %v1285 = vadd.f32 %v1235, %v1277
    %v1286 = vadd.f32 %v1237, %v1278
    %v1287 = vadd.f32 %v1239, %v1279
    %v1288 = vadd.f32 %v1241, %v1280
    %v1289 = vadd.f32 %v1245, %v1281
    %v1290 = vadd.f32 %v1247, %v1282
    %v1291 = vadd.f32 %v1249, %v1283
    %v1292 = vadd.f32 %v1251, %v1284
    %v1293 = vmul.f32 %v1285, 0.7978846
    %v1294 = vmul.f32 %v1286, 0.7978846
    %v1295 = vmul.f32 %v1287, 0.7978846
    %v1296 = vmul.f32 %v1288, 0.7978846
    %v1297 = vmul.f32 %v1289, 0.7978846
    %v1298 = vmul.f32 %v1290, 0.7978846
    %v1299 = vmul.f32 %v1291, 0.7978846
    %v1300 = vmul.f32 %v1292, 0.7978846
    %v1301 = vtanh.pop %v1293
    %v1302 = vtanh.pop %v1294
    %v1303 = vtanh.pop %v1295
    %v1304 = vtanh.pop %v1296
    %v1305 = vtanh.pop %v1297
    %v1306 = vtanh.pop %v1298
    %v1307 = vtanh.pop %v1299
    %v1308 = vtanh.pop %v1300
    %v1309 = vadd.f32 %v1301, 1.0
    %v1310 = vadd.f32 %v1302, 1.0
    %v1311 = vadd.f32 %v1303, 1.0
    %v1312 = vadd.f32 %v1304, 1.0
    %v1313 = vadd.f32 %v1305, 1.0
    %v1314 = vadd.f32 %v1306, 1.0
    %v1315 = vadd.f32 %v1307, 1.0
    %v1316 = vadd.f32 %v1308, 1.0
    %v1317 = vmul.f32 %v1253, %v1309
    %v1318 = vmul.f32 %v1254, %v1310
    %v1319 = vmul.f32 %v1255, %v1311
    %v1320 = vmul.f32 %v1256, %v1312
    %v1321 = vmul.f32 %v1257, %v1313
    %v1322 = vmul.f32 %v1258, %v1314
    %v1323 = vmul.f32 %v1259, %v1315
    %v1324 = vmul.f32 %v1260, %v1316
    %v1325 = vld [vmem:[#allocation2] sm:$0xff]
    %v1326 = vld [vmem:[#allocation2 + $0x8] sm:$0xff]
    %v1327 = vld [vmem:[#allocation2 + $0x10] sm:$0xff]
    %v1328 = vld [vmem:[#allocation2 + $0x18] sm:$0xff]
    %v1329 = vpack.c.bf16 %v1319, %v1317
    %v1330 = vpack.c.bf16 %v1320, %v1318
    %v1331 = vpack.c.bf16 %v1323, %v1321
    %v1332 = vpack.c.bf16 %v1324, %v1322
    %s1333 = scalar_lea.vmem %s3, 384
    %v1334 = vld [vmem:[%s1333] sm:$0xf]
    %v1335 = vld [vmem:[%s1333 + $0x4] sm:$0xf]
    %v1336 = vld [vmem:[%s1333 + $0x8] sm:$0xf]
    %v1337 = vld [vmem:[%s1333 + $0xc] sm:$0xf]
    %v1338 = vld [vmem:[%s1333 + $0x10] sm:$0xf]
    %v1339 = vld [vmem:[%s1333 + $0x14] sm:$0xf]
    %v1340 = vld [vmem:[%s1333 + $0x18] sm:$0xf]
    %v1341 = vld [vmem:[%s1333 + $0x1c] sm:$0xf]
    %v1342 = vld [vmem:[%s1333 + $0x20] sm:$0xf]
    %v1343 = vld [vmem:[%s1333 + $0x24] sm:$0xf]
    %v1344 = vld [vmem:[%s1333 + $0x28] sm:$0xf]
    %v1345 = vld [vmem:[%s1333 + $0x2c] sm:$0xf]
    %v1346 = vld [vmem:[%s1333 + $0x30] sm:$0xf]
    %v1347 = vld [vmem:[%s1333 + $0x34] sm:$0xf]
    %v1348 = vld [vmem:[%s1333 + $0x38] sm:$0xf]
    %v1349 = vld [vmem:[%s1333 + $0x3c] sm:$0xf]
    %v1350 = vld [vmem:[%s1333 + $0x40] sm:$0xf]
    %v1351 = vld [vmem:[%s1333 + $0x44] sm:$0xf]
    %v1352 = vld [vmem:[%s1333 + $0x48] sm:$0xf]
    %v1353 = vld [vmem:[%s1333 + $0x4c] sm:$0xf]
    %v1354 = vld [vmem:[%s1333 + $0x50] sm:$0xf]
    %v1355 = vld [vmem:[%s1333 + $0x54] sm:$0xf]
    %v1356 = vld [vmem:[%s1333 + $0x58] sm:$0xf]
    %v1357 = vld [vmem:[%s1333 + $0x5c] sm:$0xf]
    %v1358 = vld [vmem:[%s1333 + $0x60] sm:$0xf]
    %v1359 = vld [vmem:[%s1333 + $0x64] sm:$0xf]
    %v1360 = vld [vmem:[%s1333 + $0x68] sm:$0xf]
    %v1361 = vld [vmem:[%s1333 + $0x6c] sm:$0xf]
    %v1362 = vld [vmem:[%s1333 + $0x70] sm:$0xf]
    %v1363 = vld [vmem:[%s1333 + $0x74] sm:$0xf]
    %v1364 = vld [vmem:[%s1333 + $0x78] sm:$0xf]
    %v1365 = vld [vmem:[%s1333 + $0x7c] sm:$0xf]
    %v1398 = vunpack.c.l.b16 %v1334
    %v1399 = vunpack.c.l.b16 %v1335
    %v1400 = vunpack.c.l.b16 %v1336
    %v1401 = vunpack.c.l.b16 %v1337
    %v1402 = vunpack.c.l.b16 %v1338
    %v1403 = vunpack.c.l.b16 %v1339
    %v1404 = vunpack.c.l.b16 %v1340
    %v1405 = vunpack.c.l.b16 %v1341
    %v1406 = vunpack.c.l.b16 %v1342
    %v1407 = vunpack.c.l.b16 %v1343
    %v1408 = vunpack.c.l.b16 %v1344
    %v1409 = vunpack.c.l.b16 %v1345
    %v1410 = vunpack.c.l.b16 %v1346
    %v1411 = vunpack.c.l.b16 %v1347
    %v1412 = vunpack.c.l.b16 %v1348
    %v1413 = vunpack.c.l.b16 %v1349
    %v1414 = vunpack.c.l.b16 %v1350
    %v1415 = vunpack.c.l.b16 %v1351
    %v1416 = vunpack.c.l.b16 %v1352
    %v1417 = vunpack.c.l.b16 %v1353
    %v1418 = vunpack.c.l.b16 %v1354
    %v1419 = vunpack.c.l.b16 %v1355
    %v1420 = vunpack.c.l.b16 %v1356
    %v1421 = vunpack.c.l.b16 %v1357
    %v1422 = vunpack.c.l.b16 %v1358
    %v1423 = vunpack.c.l.b16 %v1359
    %v1424 = vunpack.c.l.b16 %v1360
    %v1425 = vunpack.c.l.b16 %v1361
    %v1426 = vunpack.c.l.b16 %v1362
    %v1427 = vunpack.c.l.b16 %v1363
    %v1428 = vunpack.c.l.b16 %v1364
    %v1429 = vunpack.c.l.b16 %v1365
    %v1430 = vpack.c.b16 %v1399, %v1398
    %v1431 = vpack.c.b16 %v1401, %v1400
    %v1432 = vpack.c.b16 %v1403, %v1402
    %v1433 = vpack.c.b16 %v1405, %v1404
    %v1434 = vpack.c.b16 %v1407, %v1406
    %v1435 = vpack.c.b16 %v1409, %v1408
    %v1436 = vpack.c.b16 %v1411, %v1410
    %v1437 = vpack.c.b16 %v1413, %v1412
    %v1438 = vpack.c.b16 %v1415, %v1414
    %v1439 = vpack.c.b16 %v1417, %v1416
    %v1440 = vpack.c.b16 %v1419, %v1418
    %v1441 = vpack.c.b16 %v1421, %v1420
    %v1442 = vpack.c.b16 %v1423, %v1422
    %v1443 = vpack.c.b16 %v1425, %v1424
    %v1444 = vpack.c.b16 %v1427, %v1426
    %v1445 = vpack.c.b16 %v1429, %v1428
    %1462 = vmatprep.subr.bf16.mxu0 0
    %1463 = vmatpush1.bf16.msra.mxu0 %v1430
    %1464 = vmatprep.subr.bf16.mxu0 0
    %1465 = vmatpush1.bf16.msra.mxu0 %v1431
    %1466 = vmatprep.subr.bf16.mxu0 0
    %1467 = vmatpush1.bf16.msra.mxu0 %v1432
    %1468 = vmatprep.subr.bf16.mxu0 0
    %1469 = vmatpush1.bf16.msra.mxu0 %v1433
    %1470 = vmatprep.subr.bf16.mxu0 0
    %1471 = vmatpush1.bf16.msra.mxu0 %v1434
    %1472 = vmatprep.subr.bf16.mxu0 0
    %1473 = vmatpush1.bf16.msra.mxu0 %v1435
    %1474 = vmatprep.subr.bf16.mxu0 0
    %1475 = vmatpush1.bf16.msra.mxu0 %v1436
    %1476 = vmatprep.subr.bf16.mxu0 0
    %1477 = vmatpush1.bf16.msra.mxu0 %v1437
    %1478 = vmatprep.subr.bf16.mxu0 0
    %1479 = vmatpush1.bf16.msra.mxu0 %v1438
    %1480 = vmatprep.subr.bf16.mxu0 0
    %1481 = vmatpush1.bf16.msra.mxu0 %v1439
    %1482 = vmatprep.subr.bf16.mxu0 0
    %1483 = vmatpush1.bf16.msra.mxu0 %v1440
    %1484 = vmatprep.subr.bf16.mxu0 0
    %1485 = vmatpush1.bf16.msra.mxu0 %v1441
    %1486 = vmatprep.subr.bf16.mxu0 0
    %1487 = vmatpush1.bf16.msra.mxu0 %v1442
    %1488 = vmatprep.subr.bf16.mxu0 0
    %1489 = vmatpush1.bf16.msra.mxu0 %v1443
    %1490 = vmatprep.subr.bf16.mxu0 0
    %1491 = vmatpush1.bf16.msra.mxu0 %v1444
    %1492 = vmatprep.subr.bf16.mxu0 0
    %1493 = vmatpush1.bf16.msra.mxu0 %v1445
    %1494 = vmatprep.mubr.bf16.mxu0 %v1330
    %1495 = vmatmul.mubr.bf16.gmra.mrb[0].mxu0 %v1329
    %v1496 = vpop.f32.mrb[0].mxu0
    %v1497 = vadd.f32 0.0, %v1496
    %v1498 = vpop.f32.mrb[0].mxu0
    %v1499 = vpop.f32.mrb[0].mxu0
    %v1500 = vadd.f32 0.0, %v1499
    %v1501 = vpop.f32.mrb[0].mxu0
    %1502 = vmatprep.mubr.bf16.mxu0 %v1332
    %1503 = vmatmul.mubr.bf16.gmra.mrb[0].mxu0 %v1331
    %v1504 = vpop.f32.mrb[0].mxu0
    %v1505 = vadd.f32 0.0, %v1504
    %v1506 = vpop.f32.mrb[0].mxu0
    %v1507 = vpop.f32.mrb[0].mxu0
    %v1508 = vadd.f32 0.0, %v1507
    %v1509 = vpop.f32.mrb[0].mxu0
    %1510 = vdwg.mxu0
    %v1511 = vadd.f32 %v1325, %v1497
    %v1512 = vadd.f32 %v1326, %v1500
    %v1513 = vadd.f32 %v1327, %v1505
    %v1514 = vadd.f32 %v1328, %v1508
    %1515 = vst.msk [vmem:[#allocation2] sm:$0xff] %vm96, %v1511
    %1516 = vst.msk [vmem:[#allocation2 + $0x8] sm:$0xff] %vm96, %v1512
    %1517 = vst.msk [vmem:[#allocation2 + $0x10] sm:$0xff] %vm96, %v1513
    %1518 = vst.msk [vmem:[#allocation2 + $0x18] sm:$0xff] %vm96, %v1514
    // Predicated region
    $region26: #{siglip_mlp.1} parent=1 // pred_check
      %p1519 = pneg %p22
    $region27: #{siglip_mlp.1} parent=1 // pred_check_branch
      %1521 = sbr.rel (%p1519) target = $region29
    $region28: #{siglip_mlp.1} parent=1 // pred_region
      %v1522 = vld [vmem:[#allocation2] sm:$0xff]
      %v1523 = vld [vmem:[#allocation2 + $0x8] sm:$0xff]
      %v1524 = vld [vmem:[#allocation2 + $0x10] sm:$0xff]
      %v1525 = vld [vmem:[#allocation2 + $0x18] sm:$0xff]
      %v1526 = vpack.c.bf16 %v1523, %v1522
      %v1527 = vpack.c.bf16 %v1525, %v1524
      %v1530 = vunpack.c.l.b16 %v1526
      %v1531 = vunpack.c.h.b16 %v1526
      %v1532 = vunpack.c.l.b16 %v1527
      %v1533 = vunpack.c.h.b16 %v1527
      %v1534 = vpack.c.b16 %v1530, %v1530
      %v1535 = vpack.c.b16 %v1531, %v1531
      %v1536 = vpack.c.b16 %v1532, %v1532
      %v1537 = vpack.c.b16 %v1533, %v1533
      %vm1542 = vcmask 257024
      %1543 = vst.msk [vmem:[#allocation3] sm:$0xf] %vm1542, %v1534
      %1544 = vst.msk [vmem:[#allocation3 + $0x4] sm:$0xf] %vm1542, %v1535
      %1545 = vst.msk [vmem:[#allocation3 + $0x8] sm:$0xf] %vm1542, %v1536
      %1546 = vst.msk [vmem:[#allocation3 + $0xc] sm:$0xf] %vm1542, %v1537
    $region29: #{siglip_mlp.1} parent=1 // pred_fallthru
      _
    // Predicated region
    $region30: #{siglip_mlp.1} parent=1 // pred_check
      _
    $region31: #{siglip_mlp.1} parent=1 // pred_check_branch
      %1548 = sbr.rel (0) target = $region33
    $region32: #{siglip_mlp.1} parent=1 // pred_region
      %s1550 = ssub.s32 256, 256
      %1551 = vsyncadd [#allocation4], %s1550
      %s1552 = sshll.u32 [#allocation3], 4
      %s1553 = int_to_ptr.vmem [resolvable:$true] %s1552
      %1558 = dma.vmem_to_hbm [thread:$0]  %s1553, 256, %s5, [#allocation4], 64, 64, 4
    $region33: #{siglip_mlp.1} parent=1 // pred_fallthru
      _
    // Predicated region
    $region34: #{siglip_mlp.1} parent=1 // pred_check
      _
    $region35: #{siglip_mlp.1} parent=1 // pred_check_branch
      %1560 = sbr.rel (0) target = $region37
    $region36: #{siglip_mlp.1} parent=1 // pred_region
      %1561 = dma.done [#allocation4], 256
    $region37: #{siglip_mlp.1} parent=1 // pred_fallthru
      _
    %1562 = vsyncpa [#allocation4], 1

</llo_original>
